<compile_context>
chip_gen: v7x
topology: tpu7x:2x2x1
jax: 0.10.0
libtpu: 0.0.40
codegen_flags: <defaults>
</compile_context>

<pallas_src>
import functools
import math

import jax
import jax.numpy as jnp
import numpy as np
from jax.experimental import pallas as pl
from jax.experimental.pallas import tpu as pltpu


def _attn_body(q_ref, k_ref, v_ref, mask, o_ref,
               q_scr, m_scr, l_scr, acc_scr, *, scale):
    """One (batch, q_tile, kv_tile) step of online-softmax attention.

    Refs (leading block dim of size 1 on the tensor refs):
      q_ref:   (1, bq, D)   current query tile (same block across kv axis)
      k_ref:   (1, bk, D)   current key tile
      v_ref:   (1, bk, D)   current value tile
      mask:    (bq, bk)     bool, True == masked out (or None)
      o_ref:   (1, bq, D)   output tile (written on the last kv step)
      q_scr:   (bq, D)      scaled Q, computed once per (b, q-tile)
      m_scr:   (bq, 1)      running row max      (f32)
      l_scr:   (bq, 1)      running row sum      (f32)
      acc_scr: (bq, D)      output accumulator   (f32)
    """
    ki = pl.program_id(2)

    @pl.when(ki == 0)
    def _init():
        # Fold 1/sqrt(dk) into Q once (O(bq*D)), in the input dtype so bf16
        # inputs keep the bf16 MXU path.
        q_scr[...] = q_ref[0] * scale
        m_scr[...] = jnp.full(m_scr.shape, -jnp.inf, dtype=jnp.float32)
        l_scr[...] = jnp.zeros(l_scr.shape, dtype=jnp.float32)
        acc_scr[...] = jnp.zeros(acc_scr.shape, dtype=jnp.float32)

    # Scores: one 2-D dot_general on the MXU, f32 accumulation.
    s = jnp.einsum('qd,kd->qk', q_scr[...], k_ref[0],
                   preferred_element_type=jnp.float32)
    if mask is not None:
        s = jnp.where(mask, -jnp.inf, s)

    m_prev = m_scr[...]
    m_new = jnp.maximum(m_prev, s.max(axis=-1, keepdims=True))
    # -inf-safe shift: if every score seen so far for a row is -inf,
    # exp(-inf - -inf) would be NaN.  Shifting by 0 keeps everything at 0;
    # rows fully masked across ALL kv tiles end with l == 0 and the final
    # 0 * (1/0) = NaN, matching the PyTorch reference semantics.
    m_safe = jnp.where(m_new == -jnp.inf, 0.0, m_new)

    alpha = jnp.exp(m_prev - m_safe)          # rescale previous accumulators
    p = jnp.exp(s - m_safe)                   # unnormalized probabilities

    l_scr[...] = alpha * l_scr[...] + p.sum(axis=-1, keepdims=True)
    # PV product: cast p to V's dtype so bf16 V keeps the bf16 MXU path and
    # halves p's vreg/VMEM footprint (no-op for f32 V).
    acc_scr[...] = alpha * acc_scr[...] + jnp.einsum(
        'qk,kd->qd', p.astype(v_ref.dtype), v_ref[0],
        preferred_element_type=jnp.float32)
    m_scr[...] = m_new

    @pl.when(ki == pl.num_programs(2) - 1)
    def _finalize():
        # Exact reciprocal: keeps the result within reference tolerance and
        # guarantees 1/0 == inf (fully-masked rows stay NaN like torch).
        inv_l = 1.0 / l_scr[...]
        o_ref[...] = (acc_scr[...] * inv_l).astype(o_ref.dtype)[None]


def _attn_kernel_masked(q_ref, k_ref, v_ref, mask_ref, o_ref,
                        q_scr, m_scr, l_scr, acc_scr, *, scale):
    _attn_body(q_ref, k_ref, v_ref, mask_ref[0] != 0, o_ref,
               q_scr, m_scr, l_scr, acc_scr, scale=scale)


def _attn_kernel_unmasked(q_ref, k_ref, v_ref, o_ref,
                          q_scr, m_scr, l_scr, acc_scr, *, scale):
    _attn_body(q_ref, k_ref, v_ref, None, o_ref,
               q_scr, m_scr, l_scr, acc_scr, scale=scale)


def attention(Q, K, V, mask=None, dk=64, *, block_q=256, block_k=256):
    """Pallas TPU equivalent of the PyTorch Attention.forward."""
    B, T, D = Q.shape
    S = K.shape[1]
    assert K.shape == (B, S, D) and V.shape == (B, S, D)
    if mask is not None:
        assert mask.shape == (B, T, S)          # mirrors the torch assert

    block_q = min(block_q, T)
    block_k = min(block_k, S)
    assert T % block_q == 0 and S % block_k == 0, "demo assumes tile-divisible T/S"
    if mask is not None:
        assert block_q >= 32, "int8 mask blocks need >= (32,128) tiles"

    grid = (B, T // block_q, S // block_k)      # kv (reduction) axis last
    scale = 1.0 / math.sqrt(dk)

    in_specs = [
        # Q tile is held across the kv axis (same block index for every ki).
        pl.BlockSpec((1, block_q, D), lambda b, qi, ki: (b, qi, 0)),
        pl.BlockSpec((1, block_k, D), lambda b, qi, ki: (b, ki, 0)),
        pl.BlockSpec((1, block_k, D), lambda b, qi, ki: (b, ki, 0)),
    ]
    args = [Q, K, V]

    if mask is not None:
        # TODO(synk): for pure padding masks, ship per-batch key lengths via
        # PrefetchScalarGridSpec(num_scalar_prefetch=1) and build the mask
        # in-kernel (saves B*T*S bytes of HBM traffic + the VMEM mask buffer,
        # and allows skipping fully-masked kv tiles).  The dense int8 mask is
        # kept here for full generality of the torch module's `mask` arg.
        in_specs.append(
            pl.BlockSpec((1, block_q, block_k), lambda b, qi, ki: (b, qi, ki)))
        mask_i8 = mask if mask.dtype == jnp.int8 else mask.astype(jnp.int8)
        args.append(mask_i8)                    # 1-byte elements in HBM/VMEM
        kernel = functools.partial(_attn_kernel_masked, scale=scale)
    else:
        kernel = functools.partial(_attn_kernel_unmasked, scale=scale)

    return pl.pallas_call(
        kernel,
        out_shape=jax.ShapeDtypeStruct((B, T, D), Q.dtype),
        grid_spec=pltpu.PrefetchScalarGridSpec(
            num_scalar_prefetch=0,
            grid=grid,
            in_specs=in_specs,
            out_specs=pl.BlockSpec((1, block_q, D), lambda b, qi, ki: (b, qi, 0)),
            scratch_shapes=[
                pltpu.VMEM((block_q, D), Q.dtype),      # scaled Q
                pltpu.VMEM((block_q, 1), jnp.float32),  # running max
                pltpu.VMEM((block_q, 1), jnp.float32),  # running sum
                pltpu.VMEM((block_q, D), jnp.float32),  # output accumulator
            ],
        ),
        compiler_params=pltpu.CompilerParams(
            dimension_semantics=("parallel", "parallel", "arbitrary"),
            vmem_limit_bytes=32 * 1024 * 1024),
    )(*args)


# ----------------------------- reference (plain JAX, mirrors PyTorch) -------
def _attention_ref(Q, K, V, mask, dk):
    w = jnp.einsum('btd,bsd->bts', Q, K)
    if mask is not None:
        w = jnp.where(mask, -jnp.inf, w)
    w = jax.nn.softmax(w / dk ** 0.5, axis=-1)
    return jnp.einsum('bts,bsd->btd', w, V)


if __name__ == "__main__":
    # Small but lane-dense shapes (D and tiles are multiples of 128).
    B, T, S, D, DK = 2, 128, 256, 128, 64

    key = jax.random.PRNGKey(0)
    kq, kk, kv, _ = jax.random.split(key, 4)
    Q = jax.random.normal(kq, (B, T, D), dtype=jnp.float32)
    K = jax.random.normal(kk, (B, S, D), dtype=jnp.float32)
    V = jax.random.normal(kv, (B, S, D), dtype=jnp.float32)

    # Padding-style mask: True == masked out (no fully-masked rows -> no NaNs).
    src_len = jnp.array([S, S - 37])
    mask = jnp.arange(S)[None, None, :] >= src_len[:, None, None]
    mask = jnp.broadcast_to(mask, (B, T, S))

    # Masked path with small tiles -> exercises the multi-step online softmax.
    out = jax.block_until_ready(
        attention(Q, K, V, mask=mask, dk=DK, block_q=128, block_k=128))
    ref = _attention_ref(Q, K, V, mask, DK)
    np.testing.assert_allclose(np.asarray(out), np.asarray(ref),
                               rtol=2e-3, atol=2e-3)

    # Unmasked path (mask=None branch of the module), default (large) tiles.
    out_nm = jax.block_until_ready(attention(Q, K, V, mask=None, dk=DK))
    ref_nm = _attention_ref(Q, K, V, None, DK)
    np.testing.assert_allclose(np.asarray(out_nm), np.asarray(ref_nm),
                               rtol=2e-3, atol=2e-3)

    print("KERNEL_OK")
</pallas_src>

<mosaic_0001>
module attributes {stable_mosaic.version = 11 : i64} {
  func.func @_attn_kernel_masked(%arg0: i32, %arg1: i32, %arg2: i32, %arg3: memref<1x128x128xf32, #tpu.memory_space<vmem>>, %arg4: memref<1x128x128xf32, #tpu.memory_space<vmem>>, %arg5: memref<1x128x128xf32, #tpu.memory_space<vmem>>, %arg6: memref<1x128x128xi8, #tpu.memory_space<vmem>>, %arg7: memref<1x128x128xf32, #tpu.memory_space<vmem>>, %arg8: memref<128x128xf32, #tpu.memory_space<vmem>>, %arg9: memref<128x1xf32, #tpu.memory_space<vmem>>, %arg10: memref<128x1xf32, #tpu.memory_space<vmem>>, %arg11: memref<128x128xf32, #tpu.memory_space<vmem>>) attributes {dimension_semantics = [#tpu.dimension_semantics<parallel>, #tpu.dimension_semantics<parallel>, #tpu.dimension_semantics<arbitrary>], iteration_bounds = array<i64: 2, 1, 2>, scalar_prefetch = 0 : i64, scratch_operands = 4 : i64, tpu.core_type = #tpu.core_type<tc>, window_params = [{transform_indices = @transform_0, window_bounds = array<i64: 1, 128, 128>}, {transform_indices = @transform_1, window_bounds = array<i64: 1, 128, 128>}, {transform_indices = @transform_2, window_bounds = array<i64: 1, 128, 128>}, {transform_indices = @transform_3, window_bounds = array<i64: 1, 128, 128>}, {transform_indices = @transform_4, window_bounds = array<i64: 1, 128, 128>}]} {
    %c0 = arith.constant 0 : index
    %c0_0 = arith.constant 0 : index
    %c0_1 = arith.constant 0 : index
    %0 = vector.load %arg6[%c0, %c0_0, %c0_1] : memref<1x128x128xi8, #tpu.memory_space<vmem>>, vector<1x128x128xi8>
    %1 = vector.shape_cast %0 : vector<1x128x128xi8> to vector<128x128xi8>
    %c0_i8 = arith.constant 0 : i8
    %2 = vector.broadcast %c0_i8 : i8 to vector<128x128xi8>
    %3 = arith.cmpi ne, %1, %2 : vector<128x128xi8>
    %c0_i32 = arith.constant 0 : i32
    %4 = arith.cmpi eq, %arg2, %c0_i32 : i32
    %5 = arith.extui %4 : i1 to i32
    %c0_i32_2 = arith.constant 0 : i32
    %6 = arith.cmpi ne, %5, %c0_i32_2 : i32
    scf.if %6 {
      %c0_30 = arith.constant 0 : index
      %c0_31 = arith.constant 0 : index
      %c0_32 = arith.constant 0 : index
      %44 = vector.load %arg3[%c0_30, %c0_31, %c0_32] : memref<1x128x128xf32, #tpu.memory_space<vmem>>, vector<1x128x128xf32>
      %45 = vector.shape_cast %44 : vector<1x128x128xf32> to vector<128x128xf32>
      %cst_33 = arith.constant 1.250000e-01 : f32
      %46 = vector.broadcast %cst_33 : f32 to vector<128x128xf32>
      %47 = arith.mulf %45, %46 : vector<128x128xf32>
      %c0_34 = arith.constant 0 : index
      %c0_35 = arith.constant 0 : index
      %48 = vector.load %arg8[%c0_34, %c0_35] : memref<128x128xf32, #tpu.memory_space<vmem>>, vector<128x128xf32>
      tpu.vector_store %arg8[%c0_34, %c0_35], %47 {strides = array<i32>} : memref<128x128xf32, #tpu.memory_space<vmem>>, vector<128x128xf32>,
      %cst_36 = arith.constant 0xFF800000 : f32
      %49 = vector.broadcast %cst_36 : f32 to vector<128x1xf32>
      %c0_37 = arith.constant 0 : index
      %c0_38 = arith.constant 0 : index
      %50 = vector.load %arg9[%c0_37, %c0_38] : memref<128x1xf32, #tpu.memory_space<vmem>>, vector<128x1xf32>
      tpu.vector_store %arg9[%c0_37, %c0_38], %49 {strides = array<i32>} : memref<128x1xf32, #tpu.memory_space<vmem>>, vector<128x1xf32>,
      %cst_39 = arith.constant 0.000000e+00 : f32
      %51 = vector.broadcast %cst_39 : f32 to vector<128x1xf32>
      %c0_40 = arith.constant 0 : index
      %c0_41 = arith.constant 0 : index
      %52 = vector.load %arg10[%c0_40, %c0_41] : memref<128x1xf32, #tpu.memory_space<vmem>>, vector<128x1xf32>
      tpu.vector_store %arg10[%c0_40, %c0_41], %51 {strides = array<i32>} : memref<128x1xf32, #tpu.memory_space<vmem>>, vector<128x1xf32>,
      %cst_42 = arith.constant 0.000000e+00 : f32
      %53 = vector.broadcast %cst_42 : f32 to vector<128x128xf32>
      %c0_43 = arith.constant 0 : index
      %c0_44 = arith.constant 0 : index
      %54 = vector.load %arg11[%c0_43, %c0_44] : memref<128x128xf32, #tpu.memory_space<vmem>>, vector<128x128xf32>
      tpu.vector_store %arg11[%c0_43, %c0_44], %53 {strides = array<i32>} : memref<128x128xf32, #tpu.memory_space<vmem>>, vector<128x128xf32>,
    } else {
    }
    %c0_3 = arith.constant 0 : index
    %c0_4 = arith.constant 0 : index
    %7 = vector.load %arg8[%c0_3, %c0_4] : memref<128x128xf32, #tpu.memory_space<vmem>>, vector<128x128xf32>
    %c0_5 = arith.constant 0 : index
    %c0_6 = arith.constant 0 : index
    %c0_7 = arith.constant 0 : index
    %8 = vector.load %arg4[%c0_5, %c0_6, %c0_7] : memref<1x128x128xf32, #tpu.memory_space<vmem>>, vector<1x128x128xf32>
    %9 = vector.shape_cast %8 : vector<1x128x128xf32> to vector<128x128xf32>
    "tpu.trace_start"() <{level = 10 : i32, message = "qd,kd->qk"}> : () -> ()
    %cst = arith.constant dense<0.000000e+00> : vector<128x128xf32>
    %10 = tpu.matmul %7, %9, %cst {dimension_numbers = #tpu.dot_dimension_numbers<[1], [1], [0], [0], [0, 0, 1, 0], [], []>} : vector<128x128xf32>, vector<128x128xf32>, vector<128x128xf32> -> vector<128x128xf32>
    %cst_8 = arith.constant 0xFF800000 : f32
    "tpu.trace_stop"() : () -> ()
    %11 = vector.broadcast %cst_8 : f32 to vector<128x128xf32>
    %12 = arith.select %3, %11, %10 : vector<128x128xi1>, vector<128x128xf32>
    %c0_9 = arith.constant 0 : index
    %c0_10 = arith.constant 0 : index
    %13 = vector.load %arg9[%c0_9, %c0_10] : memref<128x1xf32, #tpu.memory_space<vmem>>, vector<128x1xf32>
    %cst_11 = arith.constant dense<0xFF800000> : vector<128xf32>
    %14 = vector.multi_reduction <maximumf>, %12, %cst_11 [1] : vector<128x128xf32> to vector<128xf32>
    %15 = vector.shape_cast %14 : vector<128xf32> to vector<128x1xf32>
    %16 = arith.maximumf %13, %15 : vector<128x1xf32>
    %cst_12 = arith.constant 0xFF800000 : f32
    %17 = vector.broadcast %cst_12 : f32 to vector<128x1xf32>
    %18 = arith.cmpf oeq, %16, %17 : vector<128x1xf32>
    %cst_13 = arith.constant 0.000000e+00 : f32
    %19 = vector.broadcast %cst_13 : f32 to vector<128x1xf32>
    %20 = arith.select %18, %19, %16 : vector<128x1xi1>, vector<128x1xf32>
    %21 = arith.subf %13, %20 : vector<128x1xf32>
    %22 = math.exp %21 : vector<128x1xf32>
    %23 = vector.broadcast %20 : vector<128x1xf32> to vector<128x128xf32>
    %24 = arith.subf %12, %23 : vector<128x128xf32>
    %25 = math.exp %24 : vector<128x128xf32>
    %c0_14 = arith.constant 0 : index
    %c0_15 = arith.constant 0 : index
    %26 = vector.load %arg10[%c0_14, %c0_15] : memref<128x1xf32, #tpu.memory_space<vmem>>, vector<128x1xf32>
    %27 = arith.mulf %22, %26 : vector<128x1xf32>
    %cst_16 = arith.constant dense<0.000000e+00> : vector<128xf32>
    %28 = vector.multi_reduction <add>, %25, %cst_16 [1] : vector<128x128xf32> to vector<128xf32>
    %29 = vector.shape_cast %28 : vector<128xf32> to vector<128x1xf32>
    %30 = arith.addf %27, %29 : vector<128x1xf32>
    %c0_17 = arith.constant 0 : index
    %c0_18 = arith.constant 0 : index
    %31 = vector.load %arg10[%c0_17, %c0_18] : memref<128x1xf32, #tpu.memory_space<vmem>>, vector<128x1xf32>
    tpu.vector_store %arg10[%c0_17, %c0_18], %30 {strides = array<i32>} : memref<128x1xf32, #tpu.memory_space<vmem>>, vector<128x1xf32>,
    %c0_19 = arith.constant 0 : index
    %c0_20 = arith.constant 0 : index
    %32 = vector.load %arg11[%c0_19, %c0_20] : memref<128x128xf32, #tpu.memory_space<vmem>>, vector<128x128xf32>
    %33 = vector.broadcast %22 : vector<128x1xf32> to vector<128x128xf32>
    %34 = arith.mulf %33, %32 : vector<128x128xf32>
    %c0_21 = arith.constant 0 : index
    %c0_22 = arith.constant 0 : index
    %c0_23 = arith.constant 0 : index
    %35 = vector.load %arg5[%c0_21, %c0_22, %c0_23] : memref<1x128x128xf32, #tpu.memory_space<vmem>>, vector<1x128x128xf32>
    %36 = vector.shape_cast %35 : vector<1x128x128xf32> to vector<128x128xf32>
    "tpu.trace_start"() <{level = 10 : i32, message = "qk,kd->qd"}> : () -> ()
    %cst_24 = arith.constant dense<0.000000e+00> : vector<128x128xf32>
    %37 = tpu.matmul %25, %36, %cst_24 {dimension_numbers = #tpu.dot_dimension_numbers<[1], [0], [0], [1], [0, 0, 1, 1], [], []>} : vector<128x128xf32>, vector<128x128xf32>, vector<128x128xf32> -> vector<128x128xf32>
    "tpu.trace_stop"() : () -> ()
    %38 = arith.addf %34, %37 : vector<128x128xf32>
    %c0_25 = arith.constant 0 : index
    %c0_26 = arith.constant 0 : index
    %39 = vector.load %arg11[%c0_25, %c0_26] : memref<128x128xf32, #tpu.memory_space<vmem>>, vector<128x128xf32>
    tpu.vector_store %arg11[%c0_25, %c0_26], %38 {strides = array<i32>} : memref<128x128xf32, #tpu.memory_space<vmem>>, vector<128x128xf32>,
    %c0_27 = arith.constant 0 : index
    %c0_28 = arith.constant 0 : index
    %40 = vector.load %arg9[%c0_27, %c0_28] : memref<128x1xf32, #tpu.memory_space<vmem>>, vector<128x1xf32>
    tpu.vector_store %arg9[%c0_27, %c0_28], %16 {strides = array<i32>} : memref<128x1xf32, #tpu.memory_space<vmem>>, vector<128x1xf32>,
    %c1_i32 = arith.constant 1 : i32
    %41 = arith.cmpi eq, %arg2, %c1_i32 : i32
    %42 = arith.extui %41 : i1 to i32
    %c0_i32_29 = arith.constant 0 : i32
    %43 = arith.cmpi ne, %42, %c0_i32_29 : i32
    scf.if %43 {
      %c0_30 = arith.constant 0 : index
      %c0_31 = arith.constant 0 : index
      %44 = vector.load %arg10[%c0_30, %c0_31] : memref<128x1xf32, #tpu.memory_space<vmem>>, vector<128x1xf32>
      %cst_32 = arith.constant 1.000000e+00 : f32
      %45 = vector.broadcast %cst_32 : f32 to vector<128x1xf32>
      %46 = arith.divf %45, %44 : vector<128x1xf32>
      %c0_33 = arith.constant 0 : index
      %c0_34 = arith.constant 0 : index
      %47 = vector.load %arg11[%c0_33, %c0_34] : memref<128x128xf32, #tpu.memory_space<vmem>>, vector<128x128xf32>
      %48 = vector.broadcast %46 : vector<128x1xf32> to vector<128x128xf32>
      %49 = arith.mulf %47, %48 : vector<128x128xf32>
      %50 = vector.shape_cast %49 : vector<128x128xf32> to vector<1x128x128xf32>
      %c0_35 = arith.constant 0 : index
      %c0_36 = arith.constant 0 : index
      %c0_37 = arith.constant 0 : index
      %51 = vector.load %arg7[%c0_35, %c0_36, %c0_37] : memref<1x128x128xf32, #tpu.memory_space<vmem>>, vector<1x128x128xf32>
      tpu.vector_store %arg7[%c0_35, %c0_36, %c0_37], %50 {strides = array<i32>} : memref<1x128x128xf32, #tpu.memory_space<vmem>>, vector<1x128x128xf32>,
    } else {
    }
    return
  }
  func.func @transform_0(%arg0: i32, %arg1: i32, %arg2: i32) -> (i32, i32, i32) {
    %c0_i32 = arith.constant 0 : i32
    %c0_i32_0 = arith.constant 0 : i32
    return %arg0, %arg1, %c0_i32 : i32, i32, i32
  }
  func.func @transform_1(%arg0: i32, %arg1: i32, %arg2: i32) -> (i32, i32, i32) {
    %c0_i32 = arith.constant 0 : i32
    %c0_i32_0 = arith.constant 0 : i32
    return %arg0, %arg2, %c0_i32 : i32, i32, i32
  }
  func.func @transform_2(%arg0: i32, %arg1: i32, %arg2: i32) -> (i32, i32, i32) {
    %c0_i32 = arith.constant 0 : i32
    %c0_i32_0 = arith.constant 0 : i32
    return %arg0, %arg2, %c0_i32 : i32, i32, i32
  }
  func.func @transform_3(%arg0: i32, %arg1: i32, %arg2: i32) -> (i32, i32, i32) {
    %c0_i32 = arith.constant 0 : i32
    return %arg0, %arg1, %arg2 : i32, i32, i32
  }
  func.func @transform_4(%arg0: i32, %arg1: i32, %arg2: i32) -> (i32, i32, i32) {
    %c0_i32 = arith.constant 0 : i32
    %c0_i32_0 = arith.constant 0 : i32
    return %arg0, %arg1, %c0_i32 : i32, i32, i32
  }
}

</mosaic_0001>

<llo_original>
// kernel: tpu_custom_call.1
$region0: #{tpu_custom_call.1}
  #allocation0 [shape = 'u32[]', space=smem, size = 0x4, offset = 0x4, fixed_abs, tag = 'smem constant byte address 0x4 - core index']
  #allocation1 [shape = 'u32[144,128]{1,0:T(1,128)}', space=vmem, size = 0x12000, scoped, tag = 'internal scratch']
  #allocation2 [shape = 'f32[128,128]{1,0:T(8,128)}', space=vmem, size = 0x10000, scoped, tag = 'scratch operand']
  #allocation3 [shape = 'f32[128,1]{1,0:T(8,128)}', space=vmem, size = 0x10000, scoped, tag = 'scratch operand']
  #allocation4 [shape = 'f32[128,1]{1,0:T(8,128)}', space=vmem, size = 0x10000, scoped, tag = 'scratch operand']
  #allocation5 [shape = 'f32[128,128]{1,0:T(8,128)}', space=vmem, size = 0x10000, scoped, tag = 'scratch operand']
  %s0 = inlined_call_operand.hbm [shape: f32[2,128,128], index: 0, kind: input, shape index: {}]
  %s1 = inlined_call_operand.hbm [shape: f32[2,256,128], index: 1, kind: input, shape index: {}]
  %s2 = inlined_call_operand.hbm [shape: f32[2,256,128], index: 2, kind: input, shape index: {}]
  %s3 = inlined_call_operand.hbm [shape: s8[2,128,256], index: 3, kind: input, shape index: {}]
  %s4 = inlined_call_operand.hbm [shape: f32[2,128,128], index: 4, kind: output, shape index: {}]
  %s5 = sld [smem:[#allocation0]]
  $region73: #{tpu_custom_call.1} parent=0
    _
  %s7 = ssub.s32 1, %s5
  %s8 = scalar_select 0, %s7, %s5
  $region1: #{tpu_custom_call.1} parent=0
    #allocation6 [shape = 'u8[131072]{0}', space=vmem, size = 0x20000, scoped, tag = 'input window, operand 0']
    #allocation7 [shape = 's32[2]{0}', space=sflag, size = 0x8, scoped, tag = 'scoped memory for tpu_custom_call.1']
    #allocation8 [shape = 's32[2]{0}', space=sflag, size = 0x8, scoped, tag = 'scoped memory for tpu_custom_call.1']
    #allocation9 [shape = 'u8[131072]{0}', space=vmem, size = 0x20000, scoped, tag = 'input window, operand 1']
    #allocation10 [shape = 's32[2]{0}', space=sflag, size = 0x8, scoped, tag = 'scoped memory for tpu_custom_call.1']
    #allocation11 [shape = 'u8[131072]{0}', space=vmem, size = 0x20000, scoped, tag = 'input window, operand 2']
    #allocation12 [shape = 'u8[32768]{0}', space=vmem, size = 0x8000, scoped, tag = 'input window, operand 3']
    #allocation13 [shape = 's32[2]{0}', space=sflag, size = 0x8, scoped, tag = 'scoped memory for tpu_custom_call.1']
    #allocation14 [shape = 'u8[131072]{0}', space=vmem, size = 0x20000, scoped, tag = 'output window, operand 0']
    %9 = vsyncpa [#allocation7], 0
    %s10 = scalar_lea.sflag [#allocation7], 1
    %11 = vsyncpa %s10, 0
    %12 = vsyncpa [#allocation10], 0
    %s13 = scalar_lea.sflag [#allocation10], 1
    %14 = vsyncpa %s13, 0
    %15 = vsyncpa [#allocation13], 0
    %s16 = scalar_lea.sflag [#allocation13], 1
    %17 = vsyncpa %s16, 0
    %18 = vsyncpa [#allocation8], 0
    %s19 = scalar_lea.sflag [#allocation8], 1
    %20 = vsyncpa %s19, 0
    loop: start=0, step=1, limit=6
    $region2: #{tpu_custom_call.1} parent=1 // loop_pre_header
      _
    $region3: #{tpu_custom_call.1} parent=1 // loop_header
      %s22 = sphi 0, %s26
      %p23 = scmp.ge.s32.totalorder %s22, 6
      %s29 = sphi 0, %s48
      %s30 = sphi 0, %s44
      %s31 = sphi 0, %s40
      %s32 = sphi 0, %s29
      %s33 = sphi 0, %s30
      %s34 = sphi 0, %s31
      %s35 = sphi 0, %s32
      %s36 = sphi 0, %s33
      %s37 = sphi 0, %s34
      %s53 = sphi 0, %s55
      %s56 = sphi 0, %s53
      %s57 = sphi 0, %s56
      %s73 = sphi 0, %s57
      %s81 = sphi 0, %s83
      %s84 = sphi 0, %s81
      %s85 = sphi 0, %s84
      %s101 = sphi 0, %s85
      %s109 = sphi 0, %s111
      %s112 = sphi 0, %s109
      %s113 = sphi 0, %s112
      %s129 = sphi 0, %s113
      %s139 = sphi 0, %s141
      %s142 = sphi 0, %s139
      %s143 = sphi 0, %s142
      %s159 = sphi 0, %s143
      %s167 = sphi 0, %s169
      %s170 = sphi 0, %s167
      %s171 = sphi 0, %s170
      %s187 = sphi 0, %s171
    $region4: #{tpu_custom_call.1} parent=1 // loop_header_branch
      %25 = sbr.rel (%p23) target = $region8
    $region5: #{tpu_custom_call.1} parent=1 // loop_body
      %s27 = ssub.s32 %s22, 1
      %s28 = ssub.s32 %s22, 2
      %s38 = sadd.s32 1, %s31
      %p39 = scmp.ge.s32.totalorder %s38, 2
      %s40 = scalar_select %p39, 0, %s38
      %s41 = sadd.s32 1, %s30
      %s42 = scalar_select %p39, %s41, %s30
      %p43 = scmp.ge.s32.totalorder %s42, 1
      %s44 = scalar_select %p43, 0, %s42
      %s45 = sadd.s32 1, %s29
      %s46 = scalar_select %p43, %s45, %s29
      %p47 = scmp.ge.s32.totalorder %s46, 2
      %s48 = scalar_select %p47, 0, %s46
      %s49 = ssub.s32 %s29, %s48
      %s50 = ssub.s32 %s30, %s44
      %s51 = sor.u32 %s49, %s50
      %p52 = scmp.eq.s32.totalorder %s51, 0
      %s54 = sadd.s32 %s53, 1
      %s55 = scalar_select %p52, %s53, %s54
      %p58 = pneg %p52
      %p59 = scmp.eq.s32.totalorder %s22, 3
      %p60 = por %p58, %p59
      %p61 = scmp.ne.s32.totalorder %s53, %s56
      %p62 = scmp.eq.s32.totalorder %s22, 0
      %p63 = por %p61, %p62
      %p64 = scmp.ne.s32.totalorder %s53, %s56
      %p65 = scmp.eq.s32.totalorder %s27, 3
      %p66 = por %p64, %p65
      %p67 = scmp.ne.s32.totalorder %s56, %s57
      %p68 = scmp.eq.s32.totalorder %s27, 0
      %p69 = por %p67, %p68
      %p70 = scmp.ne.s32.totalorder %s56, %s57
      %p71 = scmp.eq.s32.totalorder %s28, 3
      %p72 = por %p70, %p71
      %p74 = scmp.ne.s32.totalorder %s57, %s73
      %p75 = scmp.eq.s32.totalorder %s28, 0
      %p76 = por %p74, %p75
      %s77 = ssub.s32 %s29, %s48
      %s78 = ssub.s32 %s31, %s40
      %s79 = sor.u32 %s77, %s78
      %p80 = scmp.eq.s32.totalorder %s79, 0
      %s82 = sadd.s32 %s81, 1
      %s83 = scalar_select %p80, %s81, %s82
      %p86 = pneg %p80
      %p87 = scmp.eq.s32.totalorder %s22, 3
      %p88 = por %p86, %p87
      %p89 = scmp.ne.s32.totalorder %s81, %s84
      %p90 = scmp.eq.s32.totalorder %s22, 0
      %p91 = por %p89, %p90
      %p92 = scmp.ne.s32.totalorder %s81, %s84
      %p93 = scmp.eq.s32.totalorder %s27, 3
      %p94 = por %p92, %p93
      %p95 = scmp.ne.s32.totalorder %s84, %s85
      %p96 = scmp.eq.s32.totalorder %s27, 0
      %p97 = por %p95, %p96
      %p98 = scmp.ne.s32.totalorder %s84, %s85
      %p99 = scmp.eq.s32.totalorder %s28, 3
      %p100 = por %p98, %p99
      %p102 = scmp.ne.s32.totalorder %s85, %s101
      %p103 = scmp.eq.s32.totalorder %s28, 0
      %p104 = por %p102, %p103
      %s105 = ssub.s32 %s29, %s48
      %s106 = ssub.s32 %s31, %s40
      %s107 = sor.u32 %s105, %s106
      %p108 = scmp.eq.s32.totalorder %s107, 0
      %s110 = sadd.s32 %s109, 1
      %s111 = scalar_select %p108, %s109, %s110
      %p114 = pneg %p108
      %p115 = scmp.eq.s32.totalorder %s22, 3
      %p116 = por %p114, %p115
      %p117 = scmp.ne.s32.totalorder %s109, %s112
      %p118 = scmp.eq.s32.totalorder %s22, 0
      %p119 = por %p117, %p118
      %p120 = scmp.ne.s32.totalorder %s109, %s112
      %p121 = scmp.eq.s32.totalorder %s27, 3
      %p122 = por %p120, %p121
      %p123 = scmp.ne.s32.totalorder %s112, %s113
      %p124 = scmp.eq.s32.totalorder %s27, 0
      %p125 = por %p123, %p124
      %p126 = scmp.ne.s32.totalorder %s112, %s113
      %p127 = scmp.eq.s32.totalorder %s28, 3
      %p128 = por %p126, %p127
      %p130 = scmp.ne.s32.totalorder %s113, %s129
      %p131 = scmp.eq.s32.totalorder %s28, 0
      %p132 = por %p130, %p131
      %s133 = ssub.s32 %s29, %s48
      %s134 = ssub.s32 %s30, %s44
      %s135 = sor.u32 %s133, %s134
      %s136 = ssub.s32 %s31, %s40
      %s137 = sor.u32 %s135, %s136
      %p138 = scmp.eq.s32.totalorder %s137, 0
      %s140 = sadd.s32 %s139, 1
      %s141 = scalar_select %p138, %s139, %s140
      %p144 = pneg %p138
      %p145 = scmp.eq.s32.totalorder %s22, 3
      %p146 = por %p144, %p145
      %p147 = scmp.ne.s32.totalorder %s139, %s142
      %p148 = scmp.eq.s32.totalorder %s22, 0
      %p149 = por %p147, %p148
      %p150 = scmp.ne.s32.totalorder %s139, %s142
      %p151 = scmp.eq.s32.totalorder %s27, 3
      %p152 = por %p150, %p151
      %p153 = scmp.ne.s32.totalorder %s142, %s143
      %p154 = scmp.eq.s32.totalorder %s27, 0
      %p155 = por %p153, %p154
      %p156 = scmp.ne.s32.totalorder %s142, %s143
      %p157 = scmp.eq.s32.totalorder %s28, 3
      %p158 = por %p156, %p157
      %p160 = scmp.ne.s32.totalorder %s143, %s159
      %p161 = scmp.eq.s32.totalorder %s28, 0
      %p162 = por %p160, %p161
      %s163 = ssub.s32 %s29, %s48
      %s164 = ssub.s32 %s30, %s44
      %s165 = sor.u32 %s163, %s164
      %p166 = scmp.eq.s32.totalorder %s165, 0
      %s168 = sadd.s32 %s167, 1
      %s169 = scalar_select %p166, %s167, %s168
      %p172 = pneg %p166
      %p173 = scmp.eq.s32.totalorder %s22, 3
      %p174 = por %p172, %p173
      %p175 = scmp.ne.s32.totalorder %s167, %s170
      %p176 = scmp.eq.s32.totalorder %s22, 0
      %p177 = por %p175, %p176
      %p178 = scmp.ne.s32.totalorder %s167, %s170
      %p179 = scmp.eq.s32.totalorder %s27, 3
      %p180 = por %p178, %p179
      %p181 = scmp.ne.s32.totalorder %s170, %s171
      %p182 = scmp.eq.s32.totalorder %s27, 0
      %p183 = por %p181, %p182
      %p184 = scmp.ne.s32.totalorder %s170, %s171
      %p185 = scmp.eq.s32.totalorder %s28, 3
      %p186 = por %p184, %p185
      %p188 = scmp.ne.s32.totalorder %s171, %s187
      %p189 = scmp.eq.s32.totalorder %s28, 0
      %p190 = por %p188, %p189
      %p191 = scmp.le.s32.totalorder 1, %s22
      %p192 = scmp.lt.s32.totalorder %s22, 5
      %p193 = pnand %p191, %p192
      %p194 = pneg %p193
      // Predicated region
      $region9: #{tpu_custom_call.1} parent=5 // pred_check
        _
      $region10: #{tpu_custom_call.1} parent=5 // pred_check_branch
        %196 = sbr.rel (%p193) target = $region12
      $region11: #{tpu_custom_call.1} parent=5 // pred_region
        %s197 = ssub.s32 %s22, 1
      $region12: #{tpu_custom_call.1} parent=5 // pred_fallthru
        _
      %p198 = scmp.lt.s32.totalorder %s22, 4
      // Predicated region
      $region13: #{tpu_custom_call.1} parent=5 // pred_check
        %p199 = pneg %p198
      $region14: #{tpu_custom_call.1} parent=5 // pred_check_branch
        %201 = sbr.rel (%p199) target = $region16
      $region15: #{tpu_custom_call.1} parent=5 // pred_region
        // Predicated region
        $region17: #{tpu_custom_call.1} parent=15 // pred_check
          %p202 = pneg %p63
        $region18: #{tpu_custom_call.1} parent=15 // pred_check_branch
          %204 = sbr.rel (%p202) target = $region20
        $region19: #{tpu_custom_call.1} parent=15 // pred_region
          %s205 = sand.u32 %s53, 1
          %s206 = scalar_lea.sflag [#allocation7], %s205
          %s207 = sand.u32 %s53, 1
          %s208 = smul.addr %s207, 128
          %s209 = scalar_lea.vmem [#allocation6], %s208
          %s210 = smul.u32 16, %s30
          %s212 = ssub.s32 2048, 2048
          %213 = vsyncadd %s206, %s212
          %s214 = smul.addr %s29, 16
          %s215 = sadd.s32 %s210, %s214
          %s216 = smul.addr %s215, 128
          %s217 = scalar_lea.hbm %s0, %s216
          %s218 = sshll.u32 %s209, 4
          %s219 = int_to_ptr.vmem [resolvable:$true] %s218
          %224 = dma.hbm_to_vmem [thread:$0]  %s217, 2048, %s219, %s206, 128, 128, 8
        $region20: #{tpu_custom_call.1} parent=15 // pred_fallthru
          _
        // Predicated region
        $region21: #{tpu_custom_call.1} parent=15 // pred_check
          %p225 = pneg %p91
        $region22: #{tpu_custom_call.1} parent=15 // pred_check_branch
          %227 = sbr.rel (%p225) target = $region24
        $region23: #{tpu_custom_call.1} parent=15 // pred_region
          %s228 = sand.u32 %s22, 1
          %s229 = scalar_lea.sflag [#allocation10], %s228
          %s230 = sand.u32 %s81, 1
          %s231 = smul.addr %s230, 128
          %s232 = scalar_lea.vmem [#allocation9], %s231
          %s233 = smul.u32 16, %s31
          %s235 = ssub.s32 2048, 2048
          %236 = vsyncadd %s229, %s235
          %s237 = smul.addr %s29, 32
          %s238 = sadd.s32 %s233, %s237
          %s239 = smul.addr %s238, 128
          %s240 = scalar_lea.hbm %s1, %s239
          %s241 = sshll.u32 %s232, 4
          %s242 = int_to_ptr.vmem [resolvable:$true] %s241
          %247 = dma.hbm_to_vmem [thread:$0]  %s240, 2048, %s242, %s229, 128, 128, 8
        $region24: #{tpu_custom_call.1} parent=15 // pred_fallthru
          _
        // Predicated region
        $region25: #{tpu_custom_call.1} parent=15 // pred_check
          %p248 = pneg %p119
        $region26: #{tpu_custom_call.1} parent=15 // pred_check_branch
          %250 = sbr.rel (%p248) target = $region28
        $region27: #{tpu_custom_call.1} parent=15 // pred_region
          %s251 = sand.u32 %s22, 1
          %s252 = scalar_lea.sflag [#allocation10], %s251
          %s253 = sand.u32 %s109, 1
          %s254 = smul.addr %s253, 128
          %s255 = scalar_lea.vmem [#allocation11], %s254
          %s256 = smul.u32 16, %s31
          %s258 = ssub.s32 2048, 2048
          %259 = vsyncadd %s252, %s258
          %s260 = smul.addr %s29, 32
          %s261 = sadd.s32 %s256, %s260
          %s262 = smul.addr %s261, 128
          %s263 = scalar_lea.hbm %s2, %s262
          %s264 = sshll.u32 %s255, 4
          %s265 = int_to_ptr.vmem [resolvable:$true] %s264
          %270 = dma.hbm_to_vmem [thread:$0]  %s263, 2048, %s265, %s252, 128, 128, 8
        $region28: #{tpu_custom_call.1} parent=15 // pred_fallthru
          _
        // Predicated region
        $region29: #{tpu_custom_call.1} parent=15 // pred_check
          %p271 = pneg %p149
        $region30: #{tpu_custom_call.1} parent=15 // pred_check_branch
          %273 = sbr.rel (%p271) target = $region32
        $region31: #{tpu_custom_call.1} parent=15 // pred_region
          %s274 = sand.u32 %s139, 1
          %s275 = scalar_lea.sflag [#allocation13], %s274
          %s276 = sand.u32 %s139, 1
          %s277 = smul.addr %s276, 32
          %s278 = scalar_lea.vmem [#allocation12], %s277
          %s279 = smul.u32 4, %s30
          %s281 = ssub.s32 512, 512
          %282 = vsyncadd %s275, %s281
          %s283 = smul.addr %s279, 2
          %s284 = sadd.s32 %s31, %s283
          %s285 = smul.addr %s29, 8
          %s286 = sadd.s32 %s284, %s285
          %s287 = smul.addr %s286, 128
          %s288 = scalar_lea.hbm %s3, %s287
          %s289 = sshll.u32 %s278, 4
          %s290 = int_to_ptr.vmem [resolvable:$true] %s289
          %295 = dma.hbm_to_vmem [thread:$0]  %s288, 512, %s290, %s275, 256, 128, 8
        $region32: #{tpu_custom_call.1} parent=15 // pred_fallthru
          _
      $region16: #{tpu_custom_call.1} parent=5 // pred_fallthru
        _
      %p296 = scmp.le.s32.totalorder 1, %s22
      %p297 = scmp.lt.s32.totalorder %s22, 5
      %p298 = pnand %p296, %p297
      %p299 = pneg %p298
      // Predicated region
      $region33: #{tpu_custom_call.1} parent=5 // pred_check
        _
      $region34: #{tpu_custom_call.1} parent=5 // pred_check_branch
        %301 = sbr.rel (%p298) target = $region36
      $region35: #{tpu_custom_call.1} parent=5 // pred_region
        %s302 = ssub.s32 %s22, 1
        %s303 = sand.u32 %s56, 1
        %s304 = scalar_lea.sflag [#allocation7], %s303
        %s305 = sand.u32 %s56, 1
        %s306 = smul.addr %s305, 128
        %s307 = scalar_lea.vmem [#allocation6], %s306
        // Predicated region
        $region37: #{tpu_custom_call.1} parent=35 // pred_check
          %p308 = pneg %p69
        $region38: #{tpu_custom_call.1} parent=35 // pred_check_branch
          %310 = sbr.rel (%p308) target = $region40
        $region39: #{tpu_custom_call.1} parent=35 // pred_region
          %311 = dma.done %s304, 2048
        $region40: #{tpu_custom_call.1} parent=35 // pred_fallthru
          _
        %s312 = sand.u32 %s27, 1
        %s313 = scalar_lea.sflag [#allocation10], %s312
        %s314 = sand.u32 %s84, 1
        %s315 = smul.addr %s314, 128
        %s316 = scalar_lea.vmem [#allocation9], %s315
        // Predicated region
        $region41: #{tpu_custom_call.1} parent=35 // pred_check
          %p317 = pneg %p97
        $region42: #{tpu_custom_call.1} parent=35 // pred_check_branch
          %319 = sbr.rel (%p317) target = $region44
        $region43: #{tpu_custom_call.1} parent=35 // pred_region
          %320 = dma.done %s313, 2048
        $region44: #{tpu_custom_call.1} parent=35 // pred_fallthru
          _
        %s321 = sand.u32 %s27, 1
        %s322 = scalar_lea.sflag [#allocation10], %s321
        %s323 = sand.u32 %s112, 1
        %s324 = smul.addr %s323, 128
        %s325 = scalar_lea.vmem [#allocation11], %s324
        // Predicated region
        $region45: #{tpu_custom_call.1} parent=35 // pred_check
          %p326 = pneg %p125
        $region46: #{tpu_custom_call.1} parent=35 // pred_check_branch
          %328 = sbr.rel (%p326) target = $region48
        $region47: #{tpu_custom_call.1} parent=35 // pred_region
          %329 = dma.done %s322, 2048
        $region48: #{tpu_custom_call.1} parent=35 // pred_fallthru
          _
        %s330 = sand.u32 %s142, 1
        %s331 = scalar_lea.sflag [#allocation13], %s330
        %s332 = sand.u32 %s142, 1
        %s333 = smul.addr %s332, 32
        %s334 = scalar_lea.vmem [#allocation12], %s333
        // Predicated region
        $region49: #{tpu_custom_call.1} parent=35 // pred_check
          %p335 = pneg %p155
        $region50: #{tpu_custom_call.1} parent=35 // pred_check_branch
          %337 = sbr.rel (%p335) target = $region52
        $region51: #{tpu_custom_call.1} parent=35 // pred_region
          %338 = dma.done %s331, 512
        $region52: #{tpu_custom_call.1} parent=35 // pred_fallthru
          _
        %s339 = sand.u32 %s56, 1
        %s340 = scalar_lea.sflag [#allocation7], %s339
        %s341 = sand.u32 %s56, 1
        %s342 = smul.addr %s341, 128
        %s343 = scalar_lea.vmem [#allocation6], %s342
        %p344 = pneg %p69
        %p345 = pneg %p66
        %s346 = sand.u32 %s27, 1
        %s347 = scalar_lea.sflag [#allocation10], %s346
        %s348 = sand.u32 %s84, 1
        %s349 = smul.addr %s348, 128
        %s350 = scalar_lea.vmem [#allocation9], %s349
        %p351 = pneg %p97
        %p352 = pneg %p94
        %s353 = sand.u32 %s27, 1
        %s354 = scalar_lea.sflag [#allocation10], %s353
        %s355 = sand.u32 %s112, 1
        %s356 = smul.addr %s355, 128
        %s357 = scalar_lea.vmem [#allocation11], %s356
        %p358 = pneg %p125
        %p359 = pneg %p122
        %s360 = sand.u32 %s142, 1
        %s361 = scalar_lea.sflag [#allocation13], %s360
        %s362 = sand.u32 %s142, 1
        %s363 = smul.addr %s362, 32
        %s364 = scalar_lea.vmem [#allocation12], %s363
        %p365 = pneg %p155
        %p366 = pneg %p152
        %p367 = pneg %p183
        %p368 = pneg %p180
        %s369 = sand.u32 %s170, 1
        %s370 = scalar_lea.sflag [#allocation8], %s369
        %s371 = sand.u32 %s170, 1
        %s372 = smul.addr %s371, 128
        %s373 = scalar_lea.vmem [#allocation14], %s372
        %s374 = smul.u32 16, %s33
        %s375 = smul.u32 16, %s34
        %s376 = smul.u32 16, %s34
        %s377 = smul.u32 4, %s33
        %s378 = smul.u32 16, %s33
        %v381 = vld [vmem:[%s334] sm:$0xff]
        %v382 = vld [vmem:[%s334 + $0x8] sm:$0xff]
        %v383 = vld [vmem:[%s334 + $0x10] sm:$0xff]
        %v384 = vld [vmem:[%s334 + $0x18] sm:$0xff]
        %vm385 = vnez %v381
        %vm386 = vnez %v382
        %vm387 = vnez %v383
        %vm388 = vnez %v384
        %p389 = scmp.eq.s32.totalorder %s34, 0
        // Predicated region
        $region53: #{tpu_custom_call.1} parent=35 // pred_check
          %p390 = pneg %p389
        $region54: #{tpu_custom_call.1} parent=35 // pred_check_branch
          %392 = sbr.rel (%p390) target = $region56
        $region55: #{tpu_custom_call.1} parent=35 // pred_region
          %v393 = vld [vmem:[%s307] sm:$0xff]
          %v394 = vld [vmem:[%s307 + $0x8] sm:$0xff]
          %v395 = vld [vmem:[%s307 + $0x10] sm:$0xff]
          %v396 = vld [vmem:[%s307 + $0x18] sm:$0xff]
          %v397 = vld [vmem:[%s307 + $0x20] sm:$0xff]
          %v398 = vld [vmem:[%s307 + $0x28] sm:$0xff]
          %v399 = vld [vmem:[%s307 + $0x30] sm:$0xff]
          %v400 = vld [vmem:[%s307 + $0x38] sm:$0xff]
          %v401 = vld [vmem:[%s307 + $0x40] sm:$0xff]
          %v402 = vld [vmem:[%s307 + $0x48] sm:$0xff]
          %v403 = vld [vmem:[%s307 + $0x50] sm:$0xff]
          %v404 = vld [vmem:[%s307 + $0x58] sm:$0xff]
          %v405 = vld [vmem:[%s307 + $0x60] sm:$0xff]
          %v406 = vld [vmem:[%s307 + $0x68] sm:$0xff]
          %v407 = vld [vmem:[%s307 + $0x70] sm:$0xff]
          %v408 = vld [vmem:[%s307 + $0x78] sm:$0xff]
          %v409 = vmul.f32 %v393, 0.125
          %v410 = vmul.f32 %v394, 0.125
          %v411 = vmul.f32 %v395, 0.125
          %v412 = vmul.f32 %v396, 0.125
          %v413 = vmul.f32 %v397, 0.125
          %v414 = vmul.f32 %v398, 0.125
          %v415 = vmul.f32 %v399, 0.125
          %v416 = vmul.f32 %v400, 0.125
          %v417 = vmul.f32 %v401, 0.125
          %v418 = vmul.f32 %v402, 0.125
          %v419 = vmul.f32 %v403, 0.125
          %v420 = vmul.f32 %v404, 0.125
          %v421 = vmul.f32 %v405, 0.125
          %v422 = vmul.f32 %v406, 0.125
          %v423 = vmul.f32 %v407, 0.125
          %v424 = vmul.f32 %v408, 0.125
          %425 = vst [vmem:[#allocation2] sm:$0xff] %v409
          %426 = vst [vmem:[#allocation2 + $0x8] sm:$0xff] %v410
          %427 = vst [vmem:[#allocation2 + $0x10] sm:$0xff] %v411
          %428 = vst [vmem:[#allocation2 + $0x18] sm:$0xff] %v412
          %429 = vst [vmem:[#allocation2 + $0x20] sm:$0xff] %v413
          %430 = vst [vmem:[#allocation2 + $0x28] sm:$0xff] %v414
          %431 = vst [vmem:[#allocation2 + $0x30] sm:$0xff] %v415
          %432 = vst [vmem:[#allocation2 + $0x38] sm:$0xff] %v416
          %433 = vst [vmem:[#allocation2 + $0x40] sm:$0xff] %v417
          %434 = vst [vmem:[#allocation2 + $0x48] sm:$0xff] %v418
          %435 = vst [vmem:[#allocation2 + $0x50] sm:$0xff] %v419
          %436 = vst [vmem:[#allocation2 + $0x58] sm:$0xff] %v420
          %437 = vst [vmem:[#allocation2 + $0x60] sm:$0xff] %v421
          %438 = vst [vmem:[#allocation2 + $0x68] sm:$0xff] %v422
          %439 = vst [vmem:[#allocation2 + $0x70] sm:$0xff] %v423
          %440 = vst [vmem:[#allocation2 + $0x78] sm:$0xff] %v424
          %vm441 = vcmask 7168
          %442 = vst.msk [vmem:[#allocation3] sm:$0xff] %vm441, -inf
          %443 = vst.msk [vmem:[#allocation3 + $0x8] sm:$0xff] %vm441, -inf
          %444 = vst.msk [vmem:[#allocation3 + $0x10] sm:$0xff] %vm441, -inf
          %445 = vst.msk [vmem:[#allocation3 + $0x18] sm:$0xff] %vm441, -inf
          %446 = vst.msk [vmem:[#allocation3 + $0x20] sm:$0xff] %vm441, -inf
          %447 = vst.msk [vmem:[#allocation3 + $0x28] sm:$0xff] %vm441, -inf
          %448 = vst.msk [vmem:[#allocation3 + $0x30] sm:$0xff] %vm441, -inf
          %449 = vst.msk [vmem:[#allocation3 + $0x38] sm:$0xff] %vm441, -inf
          %450 = vst.msk [vmem:[#allocation3 + $0x40] sm:$0xff] %vm441, -inf
          %451 = vst.msk [vmem:[#allocation3 + $0x48] sm:$0xff] %vm441, -inf
          %452 = vst.msk [vmem:[#allocation3 + $0x50] sm:$0xff] %vm441, -inf
          %453 = vst.msk [vmem:[#allocation3 + $0x58] sm:$0xff] %vm441, -inf
          %454 = vst.msk [vmem:[#allocation3 + $0x60] sm:$0xff] %vm441, -inf
          %455 = vst.msk [vmem:[#allocation3 + $0x68] sm:$0xff] %vm441, -inf
          %456 = vst.msk [vmem:[#allocation3 + $0x70] sm:$0xff] %vm441, -inf
          %457 = vst.msk [vmem:[#allocation3 + $0x78] sm:$0xff] %vm441, -inf
          %458 = vst.msk [vmem:[#allocation4] sm:$0xff] %vm441, 0.0
          %459 = vst.msk [vmem:[#allocation4 + $0x8] sm:$0xff] %vm441, 0.0
          %460 = vst.msk [vmem:[#allocation4 + $0x10] sm:$0xff] %vm441, 0.0
          %461 = vst.msk [vmem:[#allocation4 + $0x18] sm:$0xff] %vm441, 0.0
          %462 = vst.msk [vmem:[#allocation4 + $0x20] sm:$0xff] %vm441, 0.0
          %463 = vst.msk [vmem:[#allocation4 + $0x28] sm:$0xff] %vm441, 0.0
          %464 = vst.msk [vmem:[#allocation4 + $0x30] sm:$0xff] %vm441, 0.0
          %465 = vst.msk [vmem:[#allocation4 + $0x38] sm:$0xff] %vm441, 0.0
          %466 = vst.msk [vmem:[#allocation4 + $0x40] sm:$0xff] %vm441, 0.0
          %467 = vst.msk [vmem:[#allocation4 + $0x48] sm:$0xff] %vm441, 0.0
          %468 = vst.msk [vmem:[#allocation4 + $0x50] sm:$0xff] %vm441, 0.0
          %469 = vst.msk [vmem:[#allocation4 + $0x58] sm:$0xff] %vm441, 0.0
          %470 = vst.msk [vmem:[#allocation4 + $0x60] sm:$0xff] %vm441, 0.0
          %471 = vst.msk [vmem:[#allocation4 + $0x68] sm:$0xff] %vm441, 0.0
          %472 = vst.msk [vmem:[#allocation4 + $0x70] sm:$0xff] %vm441, 0.0
          %473 = vst.msk [vmem:[#allocation4 + $0x78] sm:$0xff] %vm441, 0.0
          %474 = vst [vmem:[#allocation5] sm:$0xff] 0.0
          %475 = vst [vmem:[#allocation5 + $0x8] sm:$0xff] 0.0
          %476 = vst [vmem:[#allocation5 + $0x10] sm:$0xff] 0.0
          %477 = vst [vmem:[#allocation5 + $0x18] sm:$0xff] 0.0
          %478 = vst [vmem:[#allocation5 + $0x20] sm:$0xff] 0.0
          %479 = vst [vmem:[#allocation5 + $0x28] sm:$0xff] 0.0
          %480 = vst [vmem:[#allocation5 + $0x30] sm:$0xff] 0.0
          %481 = vst [vmem:[#allocation5 + $0x38] sm:$0xff] 0.0
          %482 = vst [vmem:[#allocation5 + $0x40] sm:$0xff] 0.0
          %483 = vst [vmem:[#allocation5 + $0x48] sm:$0xff] 0.0
          %484 = vst [vmem:[#allocation5 + $0x50] sm:$0xff] 0.0
          %485 = vst [vmem:[#allocation5 + $0x58] sm:$0xff] 0.0
          %486 = vst [vmem:[#allocation5 + $0x60] sm:$0xff] 0.0
          %487 = vst [vmem:[#allocation5 + $0x68] sm:$0xff] 0.0
          %488 = vst [vmem:[#allocation5 + $0x70] sm:$0xff] 0.0
          %489 = vst [vmem:[#allocation5 + $0x78] sm:$0xff] 0.0
        $region56: #{tpu_custom_call.1} parent=35 // pred_fallthru
          _
        %v490 = vld [vmem:[#allocation2] sm:$0xff]
        %v491 = vld [vmem:[#allocation2 + $0x8] sm:$0xff]
        %v492 = vld [vmem:[#allocation2 + $0x10] sm:$0xff]
        %v493 = vld [vmem:[#allocation2 + $0x18] sm:$0xff]
        %v494 = vld [vmem:[#allocation2 + $0x20] sm:$0xff]
        %v495 = vld [vmem:[#allocation2 + $0x28] sm:$0xff]
        %v496 = vld [vmem:[#allocation2 + $0x30] sm:$0xff]
        %v497 = vld [vmem:[#allocation2 + $0x38] sm:$0xff]
        %v498 = vld [vmem:[#allocation2 + $0x40] sm:$0xff]
        %v499 = vld [vmem:[#allocation2 + $0x48] sm:$0xff]
        %v500 = vld [vmem:[#allocation2 + $0x50] sm:$0xff]
        %v501 = vld [vmem:[#allocation2 + $0x58] sm:$0xff]
        %v502 = vld [vmem:[#allocation2 + $0x60] sm:$0xff]
        %v503 = vld [vmem:[#allocation2 + $0x68] sm:$0xff]
        %v504 = vld [vmem:[#allocation2 + $0x70] sm:$0xff]
        %v505 = vld [vmem:[#allocation2 + $0x78] sm:$0xff]
        %v506 = vld [vmem:[%s316] sm:$0xff]
        %v507 = vld [vmem:[%s316 + $0x8] sm:$0xff]
        %v508 = vld [vmem:[%s316 + $0x10] sm:$0xff]
        %v509 = vld [vmem:[%s316 + $0x18] sm:$0xff]
        %v510 = vld [vmem:[%s316 + $0x20] sm:$0xff]
        %v511 = vld [vmem:[%s316 + $0x28] sm:$0xff]
        %v512 = vld [vmem:[%s316 + $0x30] sm:$0xff]
        %v513 = vld [vmem:[%s316 + $0x38] sm:$0xff]
        %v514 = vld [vmem:[%s316 + $0x40] sm:$0xff]
        %v515 = vld [vmem:[%s316 + $0x48] sm:$0xff]
        %v516 = vld [vmem:[%s316 + $0x50] sm:$0xff]
        %v517 = vld [vmem:[%s316 + $0x58] sm:$0xff]
        %v518 = vld [vmem:[%s316 + $0x60] sm:$0xff]
        %v519 = vld [vmem:[%s316 + $0x68] sm:$0xff]
        %v520 = vld [vmem:[%s316 + $0x70] sm:$0xff]
        %v521 = vld [vmem:[%s316 + $0x78] sm:$0xff]
        %522 = vmatprep.subr.mxu0 0.0
        %523 = vmatpush1.xpose.msra.mxu0 %v506
        %524 = vmatprep.subr.mxu0 0.0
        %525 = vmatpush1.xpose.msra.mxu0 %v507
        %526 = vmatprep.subr.mxu0 0.0
        %527 = vmatpush1.xpose.msra.mxu0 %v508
        %528 = vmatprep.subr.mxu0 0.0
        %529 = vmatpush1.xpose.msra.mxu0 %v509
        %530 = vmatprep.subr.mxu0 0.0
        %531 = vmatpush1.xpose.msra.mxu0 %v510
        %532 = vmatprep.subr.mxu0 0.0
        %533 = vmatpush1.xpose.msra.mxu0 %v511
        %534 = vmatprep.subr.mxu0 0.0
        %535 = vmatpush1.xpose.msra.mxu0 %v512
        %536 = vmatprep.subr.mxu0 0.0
        %537 = vmatpush1.xpose.msra.mxu0 %v513
        %538 = vmatprep.subr.mxu0 0.0
        %539 = vmatpush1.xpose.msra.mxu0 %v514
        %540 = vmatprep.subr.mxu0 0.0
        %541 = vmatpush1.xpose.msra.mxu0 %v515
        %542 = vmatprep.subr.mxu0 0.0
        %543 = vmatpush1.xpose.msra.mxu0 %v516
        %544 = vmatprep.subr.mxu0 0.0
        %545 = vmatpush1.xpose.msra.mxu0 %v517
        %546 = vmatprep.subr.mxu0 0.0
        %547 = vmatpush1.xpose.msra.mxu0 %v518
        %548 = vmatprep.subr.mxu0 0.0
        %549 = vmatpush1.xpose.msra.mxu0 %v519
        %550 = vmatprep.subr.mxu0 0.0
        %551 = vmatpush1.xpose.msra.mxu0 %v520
        %552 = vmatprep.subr.mxu0 0.0
        %553 = vmatpush1.xpose.msra.mxu0 %v521
        %554 = vmatprep.subr.mxu0 0.0
        %555 = vmatpush1.xpose.msra.mxu0 0.0
        %556 = vmatprep.subr.mxu0 0.0
        %557 = vmatpush1.xpose.msra.mxu0 0.0
        %558 = vmatprep.subr.mxu0 0.0
        %559 = vmatpush1.xpose.msra.mxu0 0.0
        %560 = vmatprep.subr.mxu0 0.0
        %561 = vmatpush1.xpose.msra.mxu0 0.0
        %562 = vmatprep.subr.mxu0 0.0
        %563 = vmatpush1.xpose.msra.mxu0 0.0
        %564 = vmatprep.subr.mxu0 0.0
        %565 = vmatpush1.xpose.msra.mxu0 0.0
        %566 = vmatprep.subr.mxu0 0.0
        %567 = vmatpush1.xpose.msra.mxu0 0.0
        %568 = vmatprep.subr.mxu0 0.0
        %569 = vmatpush1.xpose.msra.mxu0 0.0
        %570 = vmatprep.subr.mxu0 0.0
        %571 = vmatpush1.xpose.msra.mxu0 0.0
        %572 = vmatprep.subr.mxu0 0.0
        %573 = vmatpush1.xpose.msra.mxu0 0.0
        %574 = vmatprep.subr.mxu0 0.0
        %575 = vmatpush1.xpose.msra.mxu0 0.0
        %576 = vmatprep.subr.mxu0 0.0
        %577 = vmatpush1.xpose.msra.mxu0 0.0
        %578 = vmatprep.subr.mxu0 0.0
        %579 = vmatpush1.xpose.msra.mxu0 0.0
        %580 = vmatprep.subr.mxu0 0.0
        %581 = vmatpush1.xpose.msra.mxu0 0.0
        %582 = vmatprep.subr.mxu0 0.0
        %583 = vmatpush1.xpose.msra.mxu0 0.0
        %584 = vmatprep.subr.mxu0 0.0
        %585 = vmatpush1.xpose.msra.mxu0 0.0
        %586 = vmatprep.mubr.f32.mxu0 0.0
        %587 = vmatmul.mubr.f32.gmra.mrb[0].mxu0 %v490
        %v588 = vpop.f32.mrb[0].mxu0
        %v589 = vadd.f32 0.0, %v588
        %v590 = vpop.f32.mrb[0].mxu0
        %591 = vmatprep.mubr.f32.mxu0 0.0
        %592 = vmatmul.mubr.f32.gmra.mrb[0].mxu0 %v491
        %v593 = vpop.f32.mrb[0].mxu0
        %v594 = vadd.f32 0.0, %v593
        %v595 = vpop.f32.mrb[0].mxu0
        %596 = vmatprep.mubr.f32.mxu0 0.0
        %597 = vmatmul.mubr.f32.gmra.mrb[0].mxu0 %v492
        %v598 = vpop.f32.mrb[0].mxu0
        %v599 = vadd.f32 0.0, %v598
        %v600 = vpop.f32.mrb[0].mxu0
        %601 = vmatprep.mubr.f32.mxu0 0.0
        %602 = vmatmul.mubr.f32.gmra.mrb[0].mxu0 %v493
        %v603 = vpop.f32.mrb[0].mxu0
        %v604 = vadd.f32 0.0, %v603
        %v605 = vpop.f32.mrb[0].mxu0
        %606 = vmatprep.mubr.f32.mxu0 0.0
        %607 = vmatmul.mubr.f32.gmra.mrb[0].mxu0 %v494
        %v608 = vpop.f32.mrb[0].mxu0
        %v609 = vadd.f32 0.0, %v608
        %v610 = vpop.f32.mrb[0].mxu0
        %611 = vmatprep.mubr.f32.mxu0 0.0
        %612 = vmatmul.mubr.f32.gmra.mrb[0].mxu0 %v495
        %v613 = vpop.f32.mrb[0].mxu0
        %v614 = vadd.f32 0.0, %v613
        %v615 = vpop.f32.mrb[0].mxu0
        %616 = vmatprep.mubr.f32.mxu0 0.0
        %617 = vmatmul.mubr.f32.gmra.mrb[0].mxu0 %v496
        %v618 = vpop.f32.mrb[0].mxu0
        %v619 = vadd.f32 0.0, %v618
        %v620 = vpop.f32.mrb[0].mxu0
        %621 = vmatprep.mubr.f32.mxu0 0.0
        %622 = vmatmul.mubr.f32.gmra.mrb[0].mxu0 %v497
        %v623 = vpop.f32.mrb[0].mxu0
        %v624 = vadd.f32 0.0, %v623
        %v625 = vpop.f32.mrb[0].mxu0
        %626 = vmatprep.mubr.f32.mxu0 0.0
        %627 = vmatmul.mubr.f32.gmra.mrb[0].mxu0 %v498
        %v628 = vpop.f32.mrb[0].mxu0
        %v629 = vadd.f32 0.0, %v628
        %v630 = vpop.f32.mrb[0].mxu0
        %631 = vmatprep.mubr.f32.mxu0 0.0
        %632 = vmatmul.mubr.f32.gmra.mrb[0].mxu0 %v499
        %v633 = vpop.f32.mrb[0].mxu0
        %v634 = vadd.f32 0.0, %v633
        %v635 = vpop.f32.mrb[0].mxu0
        %636 = vmatprep.mubr.f32.mxu0 0.0
        %637 = vmatmul.mubr.f32.gmra.mrb[0].mxu0 %v500
        %v638 = vpop.f32.mrb[0].mxu0
        %v639 = vadd.f32 0.0, %v638
        %v640 = vpop.f32.mrb[0].mxu0
        %641 = vmatprep.mubr.f32.mxu0 0.0
        %642 = vmatmul.mubr.f32.gmra.mrb[0].mxu0 %v501
        %v643 = vpop.f32.mrb[0].mxu0
        %v644 = vadd.f32 0.0, %v643
        %v645 = vpop.f32.mrb[0].mxu0
        %646 = vmatprep.mubr.f32.mxu0 0.0
        %647 = vmatmul.mubr.f32.gmra.mrb[0].mxu0 %v502
        %v648 = vpop.f32.mrb[0].mxu0
        %v649 = vadd.f32 0.0, %v648
        %v650 = vpop.f32.mrb[0].mxu0
        %651 = vmatprep.mubr.f32.mxu0 0.0
        %652 = vmatmul.mubr.f32.gmra.mrb[0].mxu0 %v503
        %v653 = vpop.f32.mrb[0].mxu0
        %v654 = vadd.f32 0.0, %v653
        %v655 = vpop.f32.mrb[0].mxu0
        %656 = vmatprep.mubr.f32.mxu0 0.0
        %657 = vmatmul.mubr.f32.gmra.mrb[0].mxu0 %v504
        %v658 = vpop.f32.mrb[0].mxu0
        %v659 = vadd.f32 0.0, %v658
        %v660 = vpop.f32.mrb[0].mxu0
        %661 = vmatprep.mubr.f32.mxu0 0.0
        %662 = vmatmul.mubr.f32.gmra.mrb[0].mxu0 %v505
        %v663 = vpop.f32.mrb[0].mxu0
        %v664 = vadd.f32 0.0, %v663
        %v665 = vpop.f32.mrb[0].mxu0
        %666 = vdwg.mxu0
        %v667 = vsel %vm385, 16843009, 0
        %v668 = vsel %vm386, 16843009, 0
        %v669 = vsel %vm387, 16843009, 0
        %v670 = vsel %vm388, 16843009, 0
        %v671 = vunpack.c.0.s8 %v667
        %v672 = vunpack.c.1.s8 %v667
        %v673 = vunpack.c.2.s8 %v667
        %v674 = vunpack.c.3.s8 %v667
        %v675 = vunpack.c.0.s8 %v668
        %v676 = vunpack.c.1.s8 %v668
        %v677 = vunpack.c.2.s8 %v668
        %v678 = vunpack.c.3.s8 %v668
        %v679 = vunpack.c.0.s8 %v669
        %v680 = vunpack.c.1.s8 %v669
        %v681 = vunpack.c.2.s8 %v669
        %v682 = vunpack.c.3.s8 %v669
        %v683 = vunpack.c.0.s8 %v670
        %v684 = vunpack.c.1.s8 %v670
        %v685 = vunpack.c.2.s8 %v670
        %v686 = vunpack.c.3.s8 %v670
        %v687 = vpack.c.b16 %v671, %v671
        %v688 = vpack.c.b8 %v687, %v687
        %v689 = vpack.c.b16 %v672, %v672
        %v690 = vpack.c.b8 %v689, %v689
        %v691 = vpack.c.b16 %v673, %v673
        %v692 = vpack.c.b8 %v691, %v691
        %v693 = vpack.c.b16 %v674, %v674
        %v694 = vpack.c.b8 %v693, %v693
        %v695 = vpack.c.b16 %v675, %v675
        %v696 = vpack.c.b8 %v695, %v695
        %v697 = vpack.c.b16 %v676, %v676
        %v698 = vpack.c.b8 %v697, %v697
        %v699 = vpack.c.b16 %v677, %v677
        %v700 = vpack.c.b8 %v699, %v699
        %v701 = vpack.c.b16 %v678, %v678
        %v702 = vpack.c.b8 %v701, %v701
        %v703 = vpack.c.b16 %v679, %v679
        %v704 = vpack.c.b8 %v703, %v703
        %v705 = vpack.c.b16 %v680, %v680
        %v706 = vpack.c.b8 %v705, %v705
        %v707 = vpack.c.b16 %v681, %v681
        %v708 = vpack.c.b8 %v707, %v707
        %v709 = vpack.c.b16 %v682, %v682
        %v710 = vpack.c.b8 %v709, %v709
        %v711 = vpack.c.b16 %v683, %v683
        %v712 = vpack.c.b8 %v711, %v711
        %v713 = vpack.c.b16 %v684, %v684
        %v714 = vpack.c.b8 %v713, %v713
        %v715 = vpack.c.b16 %v685, %v685
        %v716 = vpack.c.b8 %v715, %v715
        %v717 = vpack.c.b16 %v686, %v686
        %v718 = vpack.c.b8 %v717, %v717
        %vm719 = vnez %v688
        %vm720 = vnez %v690
        %vm721 = vnez %v692
        %vm722 = vnez %v694
        %vm723 = vnez %v696
        %vm724 = vnez %v698
        %vm725 = vnez %v700
        %vm726 = vnez %v702
        %vm727 = vnez %v704
        %vm728 = vnez %v706
        %vm729 = vnez %v708
        %vm730 = vnez %v710
        %vm731 = vnez %v712
        %vm732 = vnez %v714
        %vm733 = vnez %v716
        %vm734 = vnez %v718
        %v735 = vsel %vm719, 16843009, 0
        %v736 = vsel %vm720, 16843009, 0
        %v737 = vsel %vm721, 16843009, 0
        %v738 = vsel %vm722, 16843009, 0
        %v739 = vsel %vm723, 16843009, 0
        %v740 = vsel %vm724, 16843009, 0
        %v741 = vsel %vm725, 16843009, 0
        %v742 = vsel %vm726, 16843009, 0
        %v743 = vsel %vm727, 16843009, 0
        %v744 = vsel %vm728, 16843009, 0
        %v745 = vsel %vm729, 16843009, 0
        %v746 = vsel %vm730, 16843009, 0
        %v747 = vsel %vm731, 16843009, 0
        %v748 = vsel %vm732, 16843009, 0
        %v749 = vsel %vm733, 16843009, 0
        %v750 = vsel %vm734, 16843009, 0
        %v751 = vunpack.c.0.s8 %v735
        %v752 = vunpack.c.0.s8 %v736
        %v753 = vunpack.c.0.s8 %v737
        %v754 = vunpack.c.0.s8 %v738
        %v755 = vunpack.c.0.s8 %v739
        %v756 = vunpack.c.0.s8 %v740
        %v757 = vunpack.c.0.s8 %v741
        %v758 = vunpack.c.0.s8 %v742
        %v759 = vunpack.c.0.s8 %v743
        %v760 = vunpack.c.0.s8 %v744
        %v761 = vunpack.c.0.s8 %v745
        %v762 = vunpack.c.0.s8 %v746
        %v763 = vunpack.c.0.s8 %v747
        %v764 = vunpack.c.0.s8 %v748
        %v765 = vunpack.c.0.s8 %v749
        %v766 = vunpack.c.0.s8 %v750
        %vm767 = vcmp.ne.s32.totalorder %v751, 0
        %vm768 = vcmp.ne.s32.totalorder %v752, 0
        %vm769 = vcmp.ne.s32.totalorder %v753, 0
        %vm770 = vcmp.ne.s32.totalorder %v754, 0
        %vm771 = vcmp.ne.s32.totalorder %v755, 0
        %vm772 = vcmp.ne.s32.totalorder %v756, 0
        %vm773 = vcmp.ne.s32.totalorder %v757, 0
        %vm774 = vcmp.ne.s32.totalorder %v758, 0
        %vm775 = vcmp.ne.s32.totalorder %v759, 0
        %vm776 = vcmp.ne.s32.totalorder %v760, 0
        %vm777 = vcmp.ne.s32.totalorder %v761, 0
        %vm778 = vcmp.ne.s32.totalorder %v762, 0
        %vm779 = vcmp.ne.s32.totalorder %v763, 0
        %vm780 = vcmp.ne.s32.totalorder %v764, 0
        %vm781 = vcmp.ne.s32.totalorder %v765, 0
        %vm782 = vcmp.ne.s32.totalorder %v766, 0
        %v783 = vsel %vm767, -inf, %v589
        %v784 = vsel %vm768, -inf, %v594
        %v785 = vsel %vm769, -inf, %v599
        %v786 = vsel %vm770, -inf, %v604
        %v787 = vsel %vm771, -inf, %v609
        %v788 = vsel %vm772, -inf, %v614
        %v789 = vsel %vm773, -inf, %v619
        %v790 = vsel %vm774, -inf, %v624
        %v791 = vsel %vm775, -inf, %v629
        %v792 = vsel %vm776, -inf, %v634
        %v793 = vsel %vm777, -inf, %v639
        %v794 = vsel %vm778, -inf, %v644
        %v795 = vsel %vm779, -inf, %v649
        %v796 = vsel %vm780, -inf, %v654
        %v797 = vsel %vm781, -inf, %v659
        %v798 = vsel %vm782, -inf, %v664
        %v799 = vld [vmem:[#allocation3] sm:$0xff]
        %v800 = vld [vmem:[#allocation3 + $0x8] sm:$0xff]
        %v801 = vld [vmem:[#allocation3 + $0x10] sm:$0xff]
        %v802 = vld [vmem:[#allocation3 + $0x18] sm:$0xff]
        %v803 = vld [vmem:[#allocation3 + $0x20] sm:$0xff]
        %v804 = vld [vmem:[#allocation3 + $0x28] sm:$0xff]
        %v805 = vld [vmem:[#allocation3 + $0x30] sm:$0xff]
        %v806 = vld [vmem:[#allocation3 + $0x38] sm:$0xff]
        %v807 = vld [vmem:[#allocation3 + $0x40] sm:$0xff]
        %v808 = vld [vmem:[#allocation3 + $0x48] sm:$0xff]
        %v809 = vld [vmem:[#allocation3 + $0x50] sm:$0xff]
        %v810 = vld [vmem:[#allocation3 + $0x58] sm:$0xff]
        %v811 = vld [vmem:[#allocation3 + $0x60] sm:$0xff]
        %v812 = vld [vmem:[#allocation3 + $0x68] sm:$0xff]
        %v813 = vld [vmem:[#allocation3 + $0x70] sm:$0xff]
        %v814 = vld [vmem:[#allocation3 + $0x78] sm:$0xff]
        %815 = vmax.xlane.f32.xlu0 %v783
        %v816 = vpop.xlane.xlu0 %815
        %817 = vmax.xlane.f32.xlu0 %v784
        %v818 = vpop.xlane.xlu0 %817
        %819 = vmax.xlane.f32.xlu0 %v785
        %v820 = vpop.xlane.xlu0 %819
        %821 = vmax.xlane.f32.xlu0 %v786
        %v822 = vpop.xlane.xlu0 %821
        %823 = vmax.xlane.f32.xlu0 %v787
        %v824 = vpop.xlane.xlu0 %823
        %825 = vmax.xlane.f32.xlu0 %v788
        %v826 = vpop.xlane.xlu0 %825
        %827 = vmax.xlane.f32.xlu0 %v789
        %v828 = vpop.xlane.xlu0 %827
        %829 = vmax.xlane.f32.xlu0 %v790
        %v830 = vpop.xlane.xlu0 %829
        %831 = vmax.xlane.f32.xlu0 %v791
        %v832 = vpop.xlane.xlu0 %831
        %833 = vmax.xlane.f32.xlu0 %v792
        %v834 = vpop.xlane.xlu0 %833
        %835 = vmax.xlane.f32.xlu0 %v793
        %v836 = vpop.xlane.xlu0 %835
        %837 = vmax.xlane.f32.xlu0 %v794
        %v838 = vpop.xlane.xlu0 %837
        %839 = vmax.xlane.f32.xlu0 %v795
        %v840 = vpop.xlane.xlu0 %839
        %841 = vmax.xlane.f32.xlu0 %v796
        %v842 = vpop.xlane.xlu0 %841
        %843 = vmax.xlane.f32.xlu0 %v797
        %v844 = vpop.xlane.xlu0 %843
        %845 = vmax.xlane.f32.xlu0 %v798
        %v846 = vpop.xlane.xlu0 %845
        %v847 = vmax.f32 %v799, %v816
        %v848 = vmax.f32 %v800, %v818
        %v849 = vmax.f32 %v801, %v820
        %v850 = vmax.f32 %v802, %v822
        %v851 = vmax.f32 %v803, %v824
        %v852 = vmax.f32 %v804, %v826
        %v853 = vmax.f32 %v805, %v828
        %v854 = vmax.f32 %v806, %v830
        %v855 = vmax.f32 %v807, %v832
        %v856 = vmax.f32 %v808, %v834
        %v857 = vmax.f32 %v809, %v836
        %v858 = vmax.f32 %v810, %v838
        %v859 = vmax.f32 %v811, %v840
        %v860 = vmax.f32 %v812, %v842
        %v861 = vmax.f32 %v813, %v844
        %v862 = vmax.f32 %v814, %v846
        %vm863 = vcmp.eq.f32.partialorder %v847, -inf
        %vm864 = vcmp.eq.f32.partialorder %v848, -inf
        %vm865 = vcmp.eq.f32.partialorder %v849, -inf
        %vm866 = vcmp.eq.f32.partialorder %v850, -inf
        %vm867 = vcmp.eq.f32.partialorder %v851, -inf
        %vm868 = vcmp.eq.f32.partialorder %v852, -inf
        %vm869 = vcmp.eq.f32.partialorder %v853, -inf
        %vm870 = vcmp.eq.f32.partialorder %v854, -inf
        %vm871 = vcmp.eq.f32.partialorder %v855, -inf
        %vm872 = vcmp.eq.f32.partialorder %v856, -inf
        %vm873 = vcmp.eq.f32.partialorder %v857, -inf
        %vm874 = vcmp.eq.f32.partialorder %v858, -inf
        %vm875 = vcmp.eq.f32.partialorder %v859, -inf
        %vm876 = vcmp.eq.f32.partialorder %v860, -inf
        %vm877 = vcmp.eq.f32.partialorder %v861, -inf
        %vm878 = vcmp.eq.f32.partialorder %v862, -inf
        %v879 = vsel %vm863, 0.0, %v847
        %v880 = vsel %vm864, 0.0, %v848
        %v881 = vsel %vm865, 0.0, %v849
        %v882 = vsel %vm866, 0.0, %v850
        %v883 = vsel %vm867, 0.0, %v851
        %v884 = vsel %vm868, 0.0, %v852
        %v885 = vsel %vm869, 0.0, %v853
        %v886 = vsel %vm870, 0.0, %v854
        %v887 = vsel %vm871, 0.0, %v855
        %v888 = vsel %vm872, 0.0, %v856
        %v889 = vsel %vm873, 0.0, %v857
        %v890 = vsel %vm874, 0.0, %v858
        %v891 = vsel %vm875, 0.0, %v859
        %v892 = vsel %vm876, 0.0, %v860
        %v893 = vsel %vm877, 0.0, %v861
        %v894 = vsel %vm878, 0.0, %v862
        %v895 = vsub.f32 %v799, %v879
        %v896 = vsub.f32 %v800, %v880
        %v897 = vsub.f32 %v801, %v881
        %v898 = vsub.f32 %v802, %v882
        %v899 = vsub.f32 %v803, %v883
        %v900 = vsub.f32 %v804, %v884
        %v901 = vsub.f32 %v805, %v885
        %v902 = vsub.f32 %v806, %v886
        %v903 = vsub.f32 %v807, %v887
        %v904 = vsub.f32 %v808, %v888
        %v905 = vsub.f32 %v809, %v889
        %v906 = vsub.f32 %v810, %v890
        %v907 = vsub.f32 %v811, %v891
        %v908 = vsub.f32 %v812, %v892
        %v909 = vsub.f32 %v813, %v893
        %v910 = vsub.f32 %v814, %v894
        %v911 = vmul.f32 %v895, 1.442695
        %v912 = vpow.pop %v911
        %v913 = vmul.f32 %v896, 1.442695
        %v914 = vpow.pop %v913
        %v915 = vmul.f32 %v897, 1.442695
        %v916 = vpow.pop %v915
        %v917 = vmul.f32 %v898, 1.442695
        %v918 = vpow.pop %v917
        %v919 = vmul.f32 %v899, 1.442695
        %v920 = vpow.pop %v919
        %v921 = vmul.f32 %v900, 1.442695
        %v922 = vpow.pop %v921
        %v923 = vmul.f32 %v901, 1.442695
        %v924 = vpow.pop %v923
        %v925 = vmul.f32 %v902, 1.442695
        %v926 = vpow.pop %v925
        %v927 = vmul.f32 %v903, 1.442695
        %v928 = vpow.pop %v927
        %v929 = vmul.f32 %v904, 1.442695
        %v930 = vpow.pop %v929
        %v931 = vmul.f32 %v905, 1.442695
        %v932 = vpow.pop %v931
        %v933 = vmul.f32 %v906, 1.442695
        %v934 = vpow.pop %v933
        %v935 = vmul.f32 %v907, 1.442695
        %v936 = vpow.pop %v935
        %v937 = vmul.f32 %v908, 1.442695
        %v938 = vpow.pop %v937
        %v939 = vmul.f32 %v909, 1.442695
        %v940 = vpow.pop %v939
        %v941 = vmul.f32 %v910, 1.442695
        %v942 = vpow.pop %v941
        %944 = vset.pattern.permute.xlu0 0
        %945 = vperm.xlu0 %944, %v879
        %v946 = vpop.permute.xlu0 %945
        %949 = vset.pattern.permute.xlu0 0
        %950 = vperm.xlu0 %949, %v880
        %v951 = vpop.permute.xlu0 %950
        %954 = vset.pattern.permute.xlu0 0
        %955 = vperm.xlu0 %954, %v881
        %v956 = vpop.permute.xlu0 %955
        %959 = vset.pattern.permute.xlu0 0
        %960 = vperm.xlu0 %959, %v882
        %v961 = vpop.permute.xlu0 %960
        %964 = vset.pattern.permute.xlu0 0
        %965 = vperm.xlu0 %964, %v883
        %v966 = vpop.permute.xlu0 %965
        %969 = vset.pattern.permute.xlu0 0
        %970 = vperm.xlu0 %969, %v884
        %v971 = vpop.permute.xlu0 %970
        %974 = vset.pattern.permute.xlu0 0
        %975 = vperm.xlu0 %974, %v885
        %v976 = vpop.permute.xlu0 %975
        %979 = vset.pattern.permute.xlu0 0
        %980 = vperm.xlu0 %979, %v886
        %v981 = vpop.permute.xlu0 %980
        %984 = vset.pattern.permute.xlu0 0
        %985 = vperm.xlu0 %984, %v887
        %v986 = vpop.permute.xlu0 %985
        %989 = vset.pattern.permute.xlu0 0
        %990 = vperm.xlu0 %989, %v888
        %v991 = vpop.permute.xlu0 %990
        %994 = vset.pattern.permute.xlu0 0
        %995 = vperm.xlu0 %994, %v889
        %v996 = vpop.permute.xlu0 %995
        %999 = vset.pattern.permute.xlu0 0
        %1000 = vperm.xlu0 %999, %v890
        %v1001 = vpop.permute.xlu0 %1000
        %1004 = vset.pattern.permute.xlu0 0
        %1005 = vperm.xlu0 %1004, %v891
        %v1006 = vpop.permute.xlu0 %1005
        %1009 = vset.pattern.permute.xlu0 0
        %1010 = vperm.xlu0 %1009, %v892
        %v1011 = vpop.permute.xlu0 %1010
        %1014 = vset.pattern.permute.xlu0 0
        %1015 = vperm.xlu0 %1014, %v893
        %v1016 = vpop.permute.xlu0 %1015
        %1019 = vset.pattern.permute.xlu0 0
        %1020 = vperm.xlu0 %1019, %v894
        %v1021 = vpop.permute.xlu0 %1020
        %v1023 = vsub.f32 %v783, %v946
        %v1024 = vsub.f32 %v784, %v951
        %v1025 = vsub.f32 %v785, %v956
        %v1026 = vsub.f32 %v786, %v961
        %v1027 = vsub.f32 %v787, %v966
        %v1028 = vsub.f32 %v788, %v971
        %v1029 = vsub.f32 %v789, %v976
        %v1030 = vsub.f32 %v790, %v981
        %v1031 = vsub.f32 %v791, %v986
        %v1032 = vsub.f32 %v792, %v991
        %v1033 = vsub.f32 %v793, %v996
        %v1034 = vsub.f32 %v794, %v1001
        %v1035 = vsub.f32 %v795, %v1006
        %v1036 = vsub.f32 %v796, %v1011
        %v1037 = vsub.f32 %v797, %v1016
        %v1038 = vsub.f32 %v798, %v1021
        %v1039 = vmul.f32 %v1023, 1.442695
        %v1040 = vpow.pop %v1039
        %v1041 = vmul.f32 %v1024, 1.442695
        %v1042 = vpow.pop %v1041
        %v1043 = vmul.f32 %v1025, 1.442695
        %v1044 = vpow.pop %v1043
        %v1045 = vmul.f32 %v1026, 1.442695
        %v1046 = vpow.pop %v1045
        %v1047 = vmul.f32 %v1027, 1.442695
        %v1048 = vpow.pop %v1047
        %v1049 = vmul.f32 %v1028, 1.442695
        %v1050 = vpow.pop %v1049
        %v1051 = vmul.f32 %v1029, 1.442695
        %v1052 = vpow.pop %v1051
        %v1053 = vmul.f32 %v1030, 1.442695
        %v1054 = vpow.pop %v1053
        %v1055 = vmul.f32 %v1031, 1.442695
        %v1056 = vpow.pop %v1055
        %v1057 = vmul.f32 %v1032, 1.442695
        %v1058 = vpow.pop %v1057
        %v1059 = vmul.f32 %v1033, 1.442695
        %v1060 = vpow.pop %v1059
        %v1061 = vmul.f32 %v1034, 1.442695
        %v1062 = vpow.pop %v1061
        %v1063 = vmul.f32 %v1035, 1.442695
        %v1064 = vpow.pop %v1063
        %v1065 = vmul.f32 %v1036, 1.442695
        %v1066 = vpow.pop %v1065
        %v1067 = vmul.f32 %v1037, 1.442695
        %v1068 = vpow.pop %v1067
        %v1069 = vmul.f32 %v1038, 1.442695
        %v1070 = vpow.pop %v1069
        %v1071 = vld [vmem:[#allocation4] sm:$0xff]
        %v1072 = vld [vmem:[#allocation4 + $0x8] sm:$0xff]
        %v1073 = vld [vmem:[#allocation4 + $0x10] sm:$0xff]
        %v1074 = vld [vmem:[#allocation4 + $0x18] sm:$0xff]
        %v1075 = vld [vmem:[#allocation4 + $0x20] sm:$0xff]
        %v1076 = vld [vmem:[#allocation4 + $0x28] sm:$0xff]
        %v1077 = vld [vmem:[#allocation4 + $0x30] sm:$0xff]
        %v1078 = vld [vmem:[#allocation4 + $0x38] sm:$0xff]
        %v1079 = vld [vmem:[#allocation4 + $0x40] sm:$0xff]
        %v1080 = vld [vmem:[#allocation4 + $0x48] sm:$0xff]
        %v1081 = vld [vmem:[#allocation4 + $0x50] sm:$0xff]
        %v1082 = vld [vmem:[#allocation4 + $0x58] sm:$0xff]
        %v1083 = vld [vmem:[#allocation4 + $0x60] sm:$0xff]
        %v1084 = vld [vmem:[#allocation4 + $0x68] sm:$0xff]
        %v1085 = vld [vmem:[#allocation4 + $0x70] sm:$0xff]
        %v1086 = vld [vmem:[#allocation4 + $0x78] sm:$0xff]
        %v1087 = vmul.f32 %v912, %v1071
        %v1088 = vmul.f32 %v914, %v1072
        %v1089 = vmul.f32 %v916, %v1073
        %v1090 = vmul.f32 %v918, %v1074
        %v1091 = vmul.f32 %v920, %v1075
        %v1092 = vmul.f32 %v922, %v1076
        %v1093 = vmul.f32 %v924, %v1077
        %v1094 = vmul.f32 %v926, %v1078
        %v1095 = vmul.f32 %v928, %v1079
        %v1096 = vmul.f32 %v930, %v1080
        %v1097 = vmul.f32 %v932, %v1081
        %v1098 = vmul.f32 %v934, %v1082
        %v1099 = vmul.f32 %v936, %v1083
        %v1100 = vmul.f32 %v938, %v1084
        %v1101 = vmul.f32 %v940, %v1085
        %v1102 = vmul.f32 %v942, %v1086
        %1103 = vadd.xlane.f32.xlu0 %v1040
        %v1104 = vpop.xlane.xlu0 %1103
        %1105 = vadd.xlane.f32.xlu0 %v1042
        %v1106 = vpop.xlane.xlu0 %1105
        %1107 = vadd.xlane.f32.xlu0 %v1044
        %v1108 = vpop.xlane.xlu0 %1107
        %1109 = vadd.xlane.f32.xlu0 %v1046
        %v1110 = vpop.xlane.xlu0 %1109
        %1111 = vadd.xlane.f32.xlu0 %v1048
        %v1112 = vpop.xlane.xlu0 %1111
        %1113 = vadd.xlane.f32.xlu0 %v1050
        %v1114 = vpop.xlane.xlu0 %1113
        %1115 = vadd.xlane.f32.xlu0 %v1052
        %v1116 = vpop.xlane.xlu0 %1115
        %1117 = vadd.xlane.f32.xlu0 %v1054
        %v1118 = vpop.xlane.xlu0 %1117
        %1119 = vadd.xlane.f32.xlu0 %v1056
        %v1120 = vpop.xlane.xlu0 %1119
        %1121 = vadd.xlane.f32.xlu0 %v1058
        %v1122 = vpop.xlane.xlu0 %1121
        %1123 = vadd.xlane.f32.xlu0 %v1060
        %v1124 = vpop.xlane.xlu0 %1123
        %1125 = vadd.xlane.f32.xlu0 %v1062
        %v1126 = vpop.xlane.xlu0 %1125
        %1127 = vadd.xlane.f32.xlu0 %v1064
        %v1128 = vpop.xlane.xlu0 %1127
        %1129 = vadd.xlane.f32.xlu0 %v1066
        %v1130 = vpop.xlane.xlu0 %1129
        %1131 = vadd.xlane.f32.xlu0 %v1068
        %v1132 = vpop.xlane.xlu0 %1131
        %1133 = vadd.xlane.f32.xlu0 %v1070
        %v1134 = vpop.xlane.xlu0 %1133
        %v1135 = vadd.f32 %v1087, %v1104
        %v1136 = vadd.f32 %v1088, %v1106
        %v1137 = vadd.f32 %v1089, %v1108
        %v1138 = vadd.f32 %v1090, %v1110
        %v1139 = vadd.f32 %v1091, %v1112
        %v1140 = vadd.f32 %v1092, %v1114
        %v1141 = vadd.f32 %v1093, %v1116
        %v1142 = vadd.f32 %v1094, %v1118
        %v1143 = vadd.f32 %v1095, %v1120
        %v1144 = vadd.f32 %v1096, %v1122
        %v1145 = vadd.f32 %v1097, %v1124
        %v1146 = vadd.f32 %v1098, %v1126
        %v1147 = vadd.f32 %v1099, %v1128
        %v1148 = vadd.f32 %v1100, %v1130
        %v1149 = vadd.f32 %v1101, %v1132
        %v1150 = vadd.f32 %v1102, %v1134
        %vm1151 = vcmask 7168
        %1152 = vst.msk [vmem:[#allocation4] sm:$0xff] %vm1151, %v1135
        %1153 = vst.msk [vmem:[#allocation4 + $0x8] sm:$0xff] %vm1151, %v1136
        %1154 = vst.msk [vmem:[#allocation4 + $0x10] sm:$0xff] %vm1151, %v1137
        %1155 = vst.msk [vmem:[#allocation4 + $0x18] sm:$0xff] %vm1151, %v1138
        %1156 = vst.msk [vmem:[#allocation4 + $0x20] sm:$0xff] %vm1151, %v1139
        %1157 = vst.msk [vmem:[#allocation4 + $0x28] sm:$0xff] %vm1151, %v1140
        %1158 = vst.msk [vmem:[#allocation4 + $0x30] sm:$0xff] %vm1151, %v1141
        %1159 = vst.msk [vmem:[#allocation4 + $0x38] sm:$0xff] %vm1151, %v1142
        %1160 = vst.msk [vmem:[#allocation4 + $0x40] sm:$0xff] %vm1151, %v1143
        %1161 = vst.msk [vmem:[#allocation4 + $0x48] sm:$0xff] %vm1151, %v1144
        %1162 = vst.msk [vmem:[#allocation4 + $0x50] sm:$0xff] %vm1151, %v1145
        %1163 = vst.msk [vmem:[#allocation4 + $0x58] sm:$0xff] %vm1151, %v1146
        %1164 = vst.msk [vmem:[#allocation4 + $0x60] sm:$0xff] %vm1151, %v1147
        %1165 = vst.msk [vmem:[#allocation4 + $0x68] sm:$0xff] %vm1151, %v1148
        %1166 = vst.msk [vmem:[#allocation4 + $0x70] sm:$0xff] %vm1151, %v1149
        %1167 = vst.msk [vmem:[#allocation4 + $0x78] sm:$0xff] %vm1151, %v1150
        %v1168 = vld [vmem:[#allocation5] sm:$0xff]
        %v1169 = vld [vmem:[#allocation5 + $0x8] sm:$0xff]
        %v1170 = vld [vmem:[#allocation5 + $0x10] sm:$0xff]
        %v1171 = vld [vmem:[#allocation5 + $0x18] sm:$0xff]
        %v1172 = vld [vmem:[#allocation5 + $0x20] sm:$0xff]
        %v1173 = vld [vmem:[#allocation5 + $0x28] sm:$0xff]
        %v1174 = vld [vmem:[#allocation5 + $0x30] sm:$0xff]
        %v1175 = vld [vmem:[#allocation5 + $0x38] sm:$0xff]
        %v1176 = vld [vmem:[#allocation5 + $0x40] sm:$0xff]
        %v1177 = vld [vmem:[#allocation5 + $0x48] sm:$0xff]
        %v1178 = vld [vmem:[#allocation5 + $0x50] sm:$0xff]
        %v1179 = vld [vmem:[#allocation5 + $0x58] sm:$0xff]
        %v1180 = vld [vmem:[#allocation5 + $0x60] sm:$0xff]
        %v1181 = vld [vmem:[#allocation5 + $0x68] sm:$0xff]
        %v1182 = vld [vmem:[#allocation5 + $0x70] sm:$0xff]
        %v1183 = vld [vmem:[#allocation5 + $0x78] sm:$0xff]
        %1185 = vset.pattern.permute.xlu0 0
        %1186 = vperm.xlu0 %1185, %v912
        %v1187 = vpop.permute.xlu0 %1186
        %1190 = vset.pattern.permute.xlu0 0
        %1191 = vperm.xlu0 %1190, %v914
        %v1192 = vpop.permute.xlu0 %1191
        %1195 = vset.pattern.permute.xlu0 0
        %1196 = vperm.xlu0 %1195, %v916
        %v1197 = vpop.permute.xlu0 %1196
        %1200 = vset.pattern.permute.xlu0 0
        %1201 = vperm.xlu0 %1200, %v918
        %v1202 = vpop.permute.xlu0 %1201
        %1205 = vset.pattern.permute.xlu0 0
        %1206 = vperm.xlu0 %1205, %v920
        %v1207 = vpop.permute.xlu0 %1206
        %1210 = vset.pattern.permute.xlu0 0
        %1211 = vperm.xlu0 %1210, %v922
        %v1212 = vpop.permute.xlu0 %1211
        %1215 = vset.pattern.permute.xlu0 0
        %1216 = vperm.xlu0 %1215, %v924
        %v1217 = vpop.permute.xlu0 %1216
        %1220 = vset.pattern.permute.xlu0 0
        %1221 = vperm.xlu0 %1220, %v926
        %v1222 = vpop.permute.xlu0 %1221
        %1225 = vset.pattern.permute.xlu0 0
        %1226 = vperm.xlu0 %1225, %v928
        %v1227 = vpop.permute.xlu0 %1226
        %1230 = vset.pattern.permute.xlu0 0
        %1231 = vperm.xlu0 %1230, %v930
        %v1232 = vpop.permute.xlu0 %1231
        %1235 = vset.pattern.permute.xlu0 0
        %1236 = vperm.xlu0 %1235, %v932
        %v1237 = vpop.permute.xlu0 %1236
        %1240 = vset.pattern.permute.xlu0 0
        %1241 = vperm.xlu0 %1240, %v934
        %v1242 = vpop.permute.xlu0 %1241
        %1245 = vset.pattern.permute.xlu0 0
        %1246 = vperm.xlu0 %1245, %v936
        %v1247 = vpop.permute.xlu0 %1246
        %1250 = vset.pattern.permute.xlu0 0
        %1251 = vperm.xlu0 %1250, %v938
        %v1252 = vpop.permute.xlu0 %1251
        %1255 = vset.pattern.permute.xlu0 0
        %1256 = vperm.xlu0 %1255, %v940
        %v1257 = vpop.permute.xlu0 %1256
        %1260 = vset.pattern.permute.xlu0 0
        %1261 = vperm.xlu0 %1260, %v942
        %v1262 = vpop.permute.xlu0 %1261
        %v1264 = vmul.f32 %v1187, %v1168
        %v1265 = vmul.f32 %v1192, %v1169
        %v1266 = vmul.f32 %v1197, %v1170
        %v1267 = vmul.f32 %v1202, %v1171
        %v1268 = vmul.f32 %v1207, %v1172
        %v1269 = vmul.f32 %v1212, %v1173
        %v1270 = vmul.f32 %v1217, %v1174
        %v1271 = vmul.f32 %v1222, %v1175
        %v1272 = vmul.f32 %v1227, %v1176
        %v1273 = vmul.f32 %v1232, %v1177
        %v1274 = vmul.f32 %v1237, %v1178
        %v1275 = vmul.f32 %v1242, %v1179
        %v1276 = vmul.f32 %v1247, %v1180
        %v1277 = vmul.f32 %v1252, %v1181
        %v1278 = vmul.f32 %v1257, %v1182
        %v1279 = vmul.f32 %v1262, %v1183
        %v1280 = vld [vmem:[%s325] sm:$0xff]
        %v1281 = vld [vmem:[%s325 + $0x8] sm:$0xff]
        %v1282 = vld [vmem:[%s325 + $0x10] sm:$0xff]
        %v1283 = vld [vmem:[%s325 + $0x18] sm:$0xff]
        %v1284 = vld [vmem:[%s325 + $0x20] sm:$0xff]
        %v1285 = vld [vmem:[%s325 + $0x28] sm:$0xff]
        %v1286 = vld [vmem:[%s325 + $0x30] sm:$0xff]
        %v1287 = vld [vmem:[%s325 + $0x38] sm:$0xff]
        %v1288 = vld [vmem:[%s325 + $0x40] sm:$0xff]
        %v1289 = vld [vmem:[%s325 + $0x48] sm:$0xff]
        %v1290 = vld [vmem:[%s325 + $0x50] sm:$0xff]
        %v1291 = vld [vmem:[%s325 + $0x58] sm:$0xff]
        %v1292 = vld [vmem:[%s325 + $0x60] sm:$0xff]
        %v1293 = vld [vmem:[%s325 + $0x68] sm:$0xff]
        %v1294 = vld [vmem:[%s325 + $0x70] sm:$0xff]
        %v1295 = vld [vmem:[%s325 + $0x78] sm:$0xff]
        %1296 = vmatprep.subr.mxu0 0.0
        %1297 = vmatpush1.msra.mxu0 %v1280
        %1298 = vmatprep.subr.mxu0 0.0
        %1299 = vmatpush1.msra.mxu0 %v1281
        %1300 = vmatprep.subr.mxu0 0.0
        %1301 = vmatpush1.msra.mxu0 %v1282
        %1302 = vmatprep.subr.mxu0 0.0
        %1303 = vmatpush1.msra.mxu0 %v1283
        %1304 = vmatprep.subr.mxu0 0.0
        %1305 = vmatpush1.msra.mxu0 %v1284
        %1306 = vmatprep.subr.mxu0 0.0
        %1307 = vmatpush1.msra.mxu0 %v1285
        %1308 = vmatprep.subr.mxu0 0.0
        %1309 = vmatpush1.msra.mxu0 %v1286
        %1310 = vmatprep.subr.mxu0 0.0
        %1311 = vmatpush1.msra.mxu0 %v1287
        %1312 = vmatprep.subr.mxu0 0.0
        %1313 = vmatpush1.msra.mxu0 %v1288
        %1314 = vmatprep.subr.mxu0 0.0
        %1315 = vmatpush1.msra.mxu0 %v1289
        %1316 = vmatprep.subr.mxu0 0.0
        %1317 = vmatpush1.msra.mxu0 %v1290
        %1318 = vmatprep.subr.mxu0 0.0
        %1319 = vmatpush1.msra.mxu0 %v1291
        %1320 = vmatprep.subr.mxu0 0.0
        %1321 = vmatpush1.msra.mxu0 %v1292
        %1322 = vmatprep.subr.mxu0 0.0
        %1323 = vmatpush1.msra.mxu0 %v1293
        %1324 = vmatprep.subr.mxu0 0.0
        %1325 = vmatpush1.msra.mxu0 %v1294
        %1326 = vmatprep.subr.mxu0 0.0
        %1327 = vmatpush1.msra.mxu0 %v1295
        %1328 = vmatprep.subr.mxu0 0.0
        %1329 = vmatpush1.msra.mxu0 0.0
        %1330 = vmatprep.subr.mxu0 0.0
        %1331 = vmatpush1.msra.mxu0 0.0
        %1332 = vmatprep.subr.mxu0 0.0
        %1333 = vmatpush1.msra.mxu0 0.0
        %1334 = vmatprep.subr.mxu0 0.0
        %1335 = vmatpush1.msra.mxu0 0.0
        %1336 = vmatprep.subr.mxu0 0.0
        %1337 = vmatpush1.msra.mxu0 0.0
        %1338 = vmatprep.subr.mxu0 0.0
        %1339 = vmatpush1.msra.mxu0 0.0
        %1340 = vmatprep.subr.mxu0 0.0
        %1341 = vmatpush1.msra.mxu0 0.0
        %1342 = vmatprep.subr.mxu0 0.0
        %1343 = vmatpush1.msra.mxu0 0.0
        %1344 = vmatprep.subr.mxu0 0.0
        %1345 = vmatpush1.msra.mxu0 0.0
        %1346 = vmatprep.subr.mxu0 0.0
        %1347 = vmatpush1.msra.mxu0 0.0
        %1348 = vmatprep.subr.mxu0 0.0
        %1349 = vmatpush1.msra.mxu0 0.0
        %1350 = vmatprep.subr.mxu0 0.0
        %1351 = vmatpush1.msra.mxu0 0.0
        %1352 = vmatprep.subr.mxu0 0.0
        %1353 = vmatpush1.msra.mxu0 0.0
        %1354 = vmatprep.subr.mxu0 0.0
        %1355 = vmatpush1.msra.mxu0 0.0
        %1356 = vmatprep.subr.mxu0 0.0
        %1357 = vmatpush1.msra.mxu0 0.0
        %1358 = vmatprep.subr.mxu0 0.0
        %1359 = vmatpush1.msra.mxu0 0.0
        %1360 = vmatprep.mubr.f32.mxu0 0.0
        %1361 = vmatmul.mubr.f32.gmra.mrb[0].mxu0 %v1040
        %v1362 = vpop.f32.mrb[0].mxu0
        %v1363 = vadd.f32 0.0, %v1362
        %v1364 = vpop.f32.mrb[0].mxu0
        %1365 = vmatprep.mubr.f32.mxu0 0.0
        %1366 = vmatmul.mubr.f32.gmra.mrb[0].mxu0 %v1042
        %v1367 = vpop.f32.mrb[0].mxu0
        %v1368 = vadd.f32 0.0, %v1367
        %v1369 = vpop.f32.mrb[0].mxu0
        %1370 = vmatprep.mubr.f32.mxu0 0.0
        %1371 = vmatmul.mubr.f32.gmra.mrb[0].mxu0 %v1044
        %v1372 = vpop.f32.mrb[0].mxu0
        %v1373 = vadd.f32 0.0, %v1372
        %v1374 = vpop.f32.mrb[0].mxu0
        %1375 = vmatprep.mubr.f32.mxu0 0.0
        %1376 = vmatmul.mubr.f32.gmra.mrb[0].mxu0 %v1046
        %v1377 = vpop.f32.mrb[0].mxu0
        %v1378 = vadd.f32 0.0, %v1377
        %v1379 = vpop.f32.mrb[0].mxu0
        %1380 = vmatprep.mubr.f32.mxu0 0.0
        %1381 = vmatmul.mubr.f32.gmra.mrb[0].mxu0 %v1048
        %v1382 = vpop.f32.mrb[0].mxu0
        %v1383 = vadd.f32 0.0, %v1382
        %v1384 = vpop.f32.mrb[0].mxu0
        %1385 = vmatprep.mubr.f32.mxu0 0.0
        %1386 = vmatmul.mubr.f32.gmra.mrb[0].mxu0 %v1050
        %v1387 = vpop.f32.mrb[0].mxu0
        %v1388 = vadd.f32 0.0, %v1387
        %v1389 = vpop.f32.mrb[0].mxu0
        %1390 = vmatprep.mubr.f32.mxu0 0.0
        %1391 = vmatmul.mubr.f32.gmra.mrb[0].mxu0 %v1052
        %v1392 = vpop.f32.mrb[0].mxu0
        %v1393 = vadd.f32 0.0, %v1392
        %v1394 = vpop.f32.mrb[0].mxu0
        %1395 = vmatprep.mubr.f32.mxu0 0.0
        %1396 = vmatmul.mubr.f32.gmra.mrb[0].mxu0 %v1054
        %v1397 = vpop.f32.mrb[0].mxu0
        %v1398 = vadd.f32 0.0, %v1397
        %v1399 = vpop.f32.mrb[0].mxu0
        %1400 = vmatprep.mubr.f32.mxu0 0.0
        %1401 = vmatmul.mubr.f32.gmra.mrb[0].mxu0 %v1056
        %v1402 = vpop.f32.mrb[0].mxu0
        %v1403 = vadd.f32 0.0, %v1402
        %v1404 = vpop.f32.mrb[0].mxu0
        %1405 = vmatprep.mubr.f32.mxu0 0.0
        %1406 = vmatmul.mubr.f32.gmra.mrb[0].mxu0 %v1058
        %v1407 = vpop.f32.mrb[0].mxu0
        %v1408 = vadd.f32 0.0, %v1407
        %v1409 = vpop.f32.mrb[0].mxu0
        %1410 = vmatprep.mubr.f32.mxu0 0.0
        %1411 = vmatmul.mubr.f32.gmra.mrb[0].mxu0 %v1060
        %v1412 = vpop.f32.mrb[0].mxu0
        %v1413 = vadd.f32 0.0, %v1412
        %v1414 = vpop.f32.mrb[0].mxu0
        %1415 = vmatprep.mubr.f32.mxu0 0.0
        %1416 = vmatmul.mubr.f32.gmra.mrb[0].mxu0 %v1062
        %v1417 = vpop.f32.mrb[0].mxu0
        %v1418 = vadd.f32 0.0, %v1417
        %v1419 = vpop.f32.mrb[0].mxu0
        %1420 = vmatprep.mubr.f32.mxu0 0.0
        %1421 = vmatmul.mubr.f32.gmra.mrb[0].mxu0 %v1064
        %v1422 = vpop.f32.mrb[0].mxu0
        %v1423 = vadd.f32 0.0, %v1422
        %v1424 = vpop.f32.mrb[0].mxu0
        %1425 = vmatprep.mubr.f32.mxu0 0.0
        %1426 = vmatmul.mubr.f32.gmra.mrb[0].mxu0 %v1066
        %v1427 = vpop.f32.mrb[0].mxu0
        %v1428 = vadd.f32 0.0, %v1427
        %v1429 = vpop.f32.mrb[0].mxu0
        %1430 = vmatprep.mubr.f32.mxu0 0.0
        %1431 = vmatmul.mubr.f32.gmra.mrb[0].mxu0 %v1068
        %v1432 = vpop.f32.mrb[0].mxu0
        %v1433 = vadd.f32 0.0, %v1432
        %v1434 = vpop.f32.mrb[0].mxu0
        %1435 = vmatprep.mubr.f32.mxu0 0.0
        %1436 = vmatmul.mubr.f32.gmra.mrb[0].mxu0 %v1070
        %v1437 = vpop.f32.mrb[0].mxu0
        %v1438 = vadd.f32 0.0, %v1437
        %v1439 = vpop.f32.mrb[0].mxu0
        %1440 = vdwg.mxu0
        %v1441 = vadd.f32 %v1264, %v1363
        %v1442 = vadd.f32 %v1265, %v1368
        %v1443 = vadd.f32 %v1266, %v1373
        %v1444 = vadd.f32 %v1267, %v1378
        %v1445 = vadd.f32 %v1268, %v1383
        %v1446 = vadd.f32 %v1269, %v1388
        %v1447 = vadd.f32 %v1270, %v1393
        %v1448 = vadd.f32 %v1271, %v1398
        %v1449 = vadd.f32 %v1272, %v1403
        %v1450 = vadd.f32 %v1273, %v1408
        %v1451 = vadd.f32 %v1274, %v1413
        %v1452 = vadd.f32 %v1275, %v1418
        %v1453 = vadd.f32 %v1276, %v1423
        %v1454 = vadd.f32 %v1277, %v1428
        %v1455 = vadd.f32 %v1278, %v1433
        %v1456 = vadd.f32 %v1279, %v1438
        %1457 = vst [vmem:[#allocation5] sm:$0xff] %v1441
        %1458 = vst [vmem:[#allocation5 + $0x8] sm:$0xff] %v1442
        %1459 = vst [vmem:[#allocation5 + $0x10] sm:$0xff] %v1443
        %1460 = vst [vmem:[#allocation5 + $0x18] sm:$0xff] %v1444
        %1461 = vst [vmem:[#allocation5 + $0x20] sm:$0xff] %v1445
        %1462 = vst [vmem:[#allocation5 + $0x28] sm:$0xff] %v1446
        %1463 = vst [vmem:[#allocation5 + $0x30] sm:$0xff] %v1447
        %1464 = vst [vmem:[#allocation5 + $0x38] sm:$0xff] %v1448
        %1465 = vst [vmem:[#allocation5 + $0x40] sm:$0xff] %v1449
        %1466 = vst [vmem:[#allocation5 + $0x48] sm:$0xff] %v1450
        %1467 = vst [vmem:[#allocation5 + $0x50] sm:$0xff] %v1451
        %1468 = vst [vmem:[#allocation5 + $0x58] sm:$0xff] %v1452
        %1469 = vst [vmem:[#allocation5 + $0x60] sm:$0xff] %v1453
        %1470 = vst [vmem:[#allocation5 + $0x68] sm:$0xff] %v1454
        %1471 = vst [vmem:[#allocation5 + $0x70] sm:$0xff] %v1455
        %1472 = vst [vmem:[#allocation5 + $0x78] sm:$0xff] %v1456
        %1473 = vst.msk [vmem:[#allocation3] sm:$0xff] %vm1151, %v847
        %1474 = vst.msk [vmem:[#allocation3 + $0x8] sm:$0xff] %vm1151, %v848
        %1475 = vst.msk [vmem:[#allocation3 + $0x10] sm:$0xff] %vm1151, %v849
        %1476 = vst.msk [vmem:[#allocation3 + $0x18] sm:$0xff] %vm1151, %v850
        %1477 = vst.msk [vmem:[#allocation3 + $0x20] sm:$0xff] %vm1151, %v851
        %1478 = vst.msk [vmem:[#allocation3 + $0x28] sm:$0xff] %vm1151, %v852
        %1479 = vst.msk [vmem:[#allocation3 + $0x30] sm:$0xff] %vm1151, %v853
        %1480 = vst.msk [vmem:[#allocation3 + $0x38] sm:$0xff] %vm1151, %v854
        %1481 = vst.msk [vmem:[#allocation3 + $0x40] sm:$0xff] %vm1151, %v855
        %1482 = vst.msk [vmem:[#allocation3 + $0x48] sm:$0xff] %vm1151, %v856
        %1483 = vst.msk [vmem:[#allocation3 + $0x50] sm:$0xff] %vm1151, %v857
        %1484 = vst.msk [vmem:[#allocation3 + $0x58] sm:$0xff] %vm1151, %v858
        %1485 = vst.msk [vmem:[#allocation3 + $0x60] sm:$0xff] %vm1151, %v859
        %1486 = vst.msk [vmem:[#allocation3 + $0x68] sm:$0xff] %vm1151, %v860
        %1487 = vst.msk [vmem:[#allocation3 + $0x70] sm:$0xff] %vm1151, %v861
        %1488 = vst.msk [vmem:[#allocation3 + $0x78] sm:$0xff] %vm1151, %v862
        %p1489 = scmp.eq.s32.totalorder %s34, 1
        // Predicated region
        $region57: #{tpu_custom_call.1} parent=35 // pred_check
          %p1490 = pneg %p1489
        $region58: #{tpu_custom_call.1} parent=35 // pred_check_branch
          %1492 = sbr.rel (%p1490) target = $region60
        $region59: #{tpu_custom_call.1} parent=35 // pred_region
          %v1493 = vld [vmem:[#allocation4] sm:$0xff]
          %v1494 = vld [vmem:[#allocation4 + $0x8] sm:$0xff]
          %v1495 = vld [vmem:[#allocation4 + $0x10] sm:$0xff]
          %v1496 = vld [vmem:[#allocation4 + $0x18] sm:$0xff]
          %v1497 = vld [vmem:[#allocation4 + $0x20] sm:$0xff]
          %v1498 = vld [vmem:[#allocation4 + $0x28] sm:$0xff]
          %v1499 = vld [vmem:[#allocation4 + $0x30] sm:$0xff]
          %v1500 = vld [vmem:[#allocation4 + $0x38] sm:$0xff]
          %v1501 = vld [vmem:[#allocation4 + $0x40] sm:$0xff]
          %v1502 = vld [vmem:[#allocation4 + $0x48] sm:$0xff]
          %v1503 = vld [vmem:[#allocation4 + $0x50] sm:$0xff]
          %v1504 = vld [vmem:[#allocation4 + $0x58] sm:$0xff]
          %v1505 = vld [vmem:[#allocation4 + $0x60] sm:$0xff]
          %v1506 = vld [vmem:[#allocation4 + $0x68] sm:$0xff]
          %v1507 = vld [vmem:[#allocation4 + $0x70] sm:$0xff]
          %v1508 = vld [vmem:[#allocation4 + $0x78] sm:$0xff]
          %v1509 = vrcp.pop %v1493
          %v1510 = vmul.f32 1.0, %v1509
          %v1511 = vrcp.pop %v1494
          %v1512 = vmul.f32 1.0, %v1511
          %v1513 = vrcp.pop %v1495
          %v1514 = vmul.f32 1.0, %v1513
          %v1515 = vrcp.pop %v1496
          %v1516 = vmul.f32 1.0, %v1515
          %v1517 = vrcp.pop %v1497
          %v1518 = vmul.f32 1.0, %v1517
          %v1519 = vrcp.pop %v1498
          %v1520 = vmul.f32 1.0, %v1519
          %v1521 = vrcp.pop %v1499
          %v1522 = vmul.f32 1.0, %v1521
          %v1523 = vrcp.pop %v1500
          %v1524 = vmul.f32 1.0, %v1523
          %v1525 = vrcp.pop %v1501
          %v1526 = vmul.f32 1.0, %v1525
          %v1527 = vrcp.pop %v1502
          %v1528 = vmul.f32 1.0, %v1527
          %v1529 = vrcp.pop %v1503
          %v1530 = vmul.f32 1.0, %v1529
          %v1531 = vrcp.pop %v1504
          %v1532 = vmul.f32 1.0, %v1531
          %v1533 = vrcp.pop %v1505
          %v1534 = vmul.f32 1.0, %v1533
          %v1535 = vrcp.pop %v1506
          %v1536 = vmul.f32 1.0, %v1535
          %v1537 = vrcp.pop %v1507
          %v1538 = vmul.f32 1.0, %v1537
          %v1539 = vrcp.pop %v1508
          %v1540 = vmul.f32 1.0, %v1539
          %v1541 = vld [vmem:[#allocation5] sm:$0xff]
          %v1542 = vld [vmem:[#allocation5 + $0x8] sm:$0xff]
          %v1543 = vld [vmem:[#allocation5 + $0x10] sm:$0xff]
          %v1544 = vld [vmem:[#allocation5 + $0x18] sm:$0xff]
          %v1545 = vld [vmem:[#allocation5 + $0x20] sm:$0xff]
          %v1546 = vld [vmem:[#allocation5 + $0x28] sm:$0xff]
          %v1547 = vld [vmem:[#allocation5 + $0x30] sm:$0xff]
          %v1548 = vld [vmem:[#allocation5 + $0x38] sm:$0xff]
          %v1549 = vld [vmem:[#allocation5 + $0x40] sm:$0xff]
          %v1550 = vld [vmem:[#allocation5 + $0x48] sm:$0xff]
          %v1551 = vld [vmem:[#allocation5 + $0x50] sm:$0xff]
          %v1552 = vld [vmem:[#allocation5 + $0x58] sm:$0xff]
          %v1553 = vld [vmem:[#allocation5 + $0x60] sm:$0xff]
          %v1554 = vld [vmem:[#allocation5 + $0x68] sm:$0xff]
          %v1555 = vld [vmem:[#allocation5 + $0x70] sm:$0xff]
          %v1556 = vld [vmem:[#allocation5 + $0x78] sm:$0xff]
          %1558 = vset.pattern.permute.xlu0 0
          %1559 = vperm.xlu0 %1558, %v1510
          %v1560 = vpop.permute.xlu0 %1559
          %1563 = vset.pattern.permute.xlu0 0
          %1564 = vperm.xlu0 %1563, %v1512
          %v1565 = vpop.permute.xlu0 %1564
          %1568 = vset.pattern.permute.xlu0 0
          %1569 = vperm.xlu0 %1568, %v1514
          %v1570 = vpop.permute.xlu0 %1569
          %1573 = vset.pattern.permute.xlu0 0
          %1574 = vperm.xlu0 %1573, %v1516
          %v1575 = vpop.permute.xlu0 %1574
          %1578 = vset.pattern.permute.xlu0 0
          %1579 = vperm.xlu0 %1578, %v1518
          %v1580 = vpop.permute.xlu0 %1579
          %1583 = vset.pattern.permute.xlu0 0
          %1584 = vperm.xlu0 %1583, %v1520
          %v1585 = vpop.permute.xlu0 %1584
          %1588 = vset.pattern.permute.xlu0 0
          %1589 = vperm.xlu0 %1588, %v1522
          %v1590 = vpop.permute.xlu0 %1589
          %1593 = vset.pattern.permute.xlu0 0
          %1594 = vperm.xlu0 %1593, %v1524
          %v1595 = vpop.permute.xlu0 %1594
          %1598 = vset.pattern.permute.xlu0 0
          %1599 = vperm.xlu0 %1598, %v1526
          %v1600 = vpop.permute.xlu0 %1599
          %1603 = vset.pattern.permute.xlu0 0
          %1604 = vperm.xlu0 %1603, %v1528
          %v1605 = vpop.permute.xlu0 %1604
          %1608 = vset.pattern.permute.xlu0 0
          %1609 = vperm.xlu0 %1608, %v1530
          %v1610 = vpop.permute.xlu0 %1609
          %1613 = vset.pattern.permute.xlu0 0
          %1614 = vperm.xlu0 %1613, %v1532
          %v1615 = vpop.permute.xlu0 %1614
          %1618 = vset.pattern.permute.xlu0 0
          %1619 = vperm.xlu0 %1618, %v1534
          %v1620 = vpop.permute.xlu0 %1619
          %1623 = vset.pattern.permute.xlu0 0
          %1624 = vperm.xlu0 %1623, %v1536
          %v1625 = vpop.permute.xlu0 %1624
          %1628 = vset.pattern.permute.xlu0 0
          %1629 = vperm.xlu0 %1628, %v1538
          %v1630 = vpop.permute.xlu0 %1629
          %1633 = vset.pattern.permute.xlu0 0
          %1634 = vperm.xlu0 %1633, %v1540
          %v1635 = vpop.permute.xlu0 %1634
          %v1637 = vmul.f32 %v1541, %v1560
          %v1638 = vmul.f32 %v1542, %v1565
          %v1639 = vmul.f32 %v1543, %v1570
          %v1640 = vmul.f32 %v1544, %v1575
          %v1641 = vmul.f32 %v1545, %v1580
          %v1642 = vmul.f32 %v1546, %v1585
          %v1643 = vmul.f32 %v1547, %v1590
          %v1644 = vmul.f32 %v1548, %v1595
          %v1645 = vmul.f32 %v1549, %v1600
          %v1646 = vmul.f32 %v1550, %v1605
          %v1647 = vmul.f32 %v1551, %v1610
          %v1648 = vmul.f32 %v1552, %v1615
          %v1649 = vmul.f32 %v1553, %v1620
          %v1650 = vmul.f32 %v1554, %v1625
          %v1651 = vmul.f32 %v1555, %v1630
          %v1652 = vmul.f32 %v1556, %v1635
          %1653 = vst [vmem:[%s373] sm:$0xff] %v1637
          %1654 = vst [vmem:[%s373 + $0x8] sm:$0xff] %v1638
          %1655 = vst [vmem:[%s373 + $0x10] sm:$0xff] %v1639
          %1656 = vst [vmem:[%s373 + $0x18] sm:$0xff] %v1640
          %1657 = vst [vmem:[%s373 + $0x20] sm:$0xff] %v1641
          %1658 = vst [vmem:[%s373 + $0x28] sm:$0xff] %v1642
          %1659 = vst [vmem:[%s373 + $0x30] sm:$0xff] %v1643
          %1660 = vst [vmem:[%s373 + $0x38] sm:$0xff] %v1644
          %1661 = vst [vmem:[%s373 + $0x40] sm:$0xff] %v1645
          %1662 = vst [vmem:[%s373 + $0x48] sm:$0xff] %v1646
          %1663 = vst [vmem:[%s373 + $0x50] sm:$0xff] %v1647
          %1664 = vst [vmem:[%s373 + $0x58] sm:$0xff] %v1648
          %1665 = vst [vmem:[%s373 + $0x60] sm:$0xff] %v1649
          %1666 = vst [vmem:[%s373 + $0x68] sm:$0xff] %v1650
          %1667 = vst [vmem:[%s373 + $0x70] sm:$0xff] %v1651
          %1668 = vst [vmem:[%s373 + $0x78] sm:$0xff] %v1652
        $region60: #{tpu_custom_call.1} parent=35 // pred_fallthru
          _
        %s1669 = sand.u32 %s170, 1
        %s1670 = scalar_lea.sflag [#allocation8], %s1669
        %s1671 = sand.u32 %s170, 1
        %s1672 = smul.addr %s1671, 128
        %s1673 = scalar_lea.vmem [#allocation14], %s1672
        // Predicated region
        $region61: #{tpu_custom_call.1} parent=35 // pred_check
          %p1674 = pneg %p180
        $region62: #{tpu_custom_call.1} parent=35 // pred_check_branch
          %1676 = sbr.rel (%p1674) target = $region64
        $region63: #{tpu_custom_call.1} parent=35 // pred_region
          %s1677 = smul.u32 16, %s33
          %s1679 = ssub.s32 2048, 2048
          %1680 = vsyncadd %s1670, %s1679
          %s1681 = smul.addr %s32, 16
          %s1682 = sadd.s32 %s1677, %s1681
          %s1683 = smul.addr %s1682, 128
          %s1684 = scalar_lea.hbm %s4, %s1683
          %s1685 = sshll.u32 %s1673, 4
          %s1686 = int_to_ptr.vmem [resolvable:$true] %s1685
          %1691 = dma.vmem_to_hbm [thread:$0]  %s1686, 2048, %s1684, %s1670, 128, 128, 8
        $region64: #{tpu_custom_call.1} parent=35 // pred_fallthru
          _
      $region36: #{tpu_custom_call.1} parent=5 // pred_fallthru
        _
      %p1692 = scmp.le.s32.totalorder 2, %s22
      // Predicated region
      $region65: #{tpu_custom_call.1} parent=5 // pred_check
        %p1693 = pneg %p1692
      $region66: #{tpu_custom_call.1} parent=5 // pred_check_branch
        %1695 = sbr.rel (%p1693) target = $region68
      $region67: #{tpu_custom_call.1} parent=5 // pred_region
        %s1696 = ssub.s32 %s22, 2
        // Predicated region
        $region69: #{tpu_custom_call.1} parent=67 // pred_check
          %p1697 = pneg %p186
        $region70: #{tpu_custom_call.1} parent=67 // pred_check_branch
          %1699 = sbr.rel (%p1697) target = $region72
        $region71: #{tpu_custom_call.1} parent=67 // pred_region
          %s1700 = sand.u32 %s171, 1
          %s1701 = scalar_lea.sflag [#allocation8], %s1700
          %s1702 = sand.u32 %s171, 1
          %s1703 = smul.addr %s1702, 128
          %s1704 = scalar_lea.vmem [#allocation14], %s1703
          %1705 = dma.done %s1701, 2048
        $region72: #{tpu_custom_call.1} parent=67 // pred_fallthru
          _
      $region68: #{tpu_custom_call.1} parent=5 // pred_fallthru
        _
    $region6: #{tpu_custom_call.1} parent=1 // loop_footer
      %s26 = sadd.s32 1, %s22
    $region7: #{tpu_custom_call.1} parent=1 // loop_footer_branch
      %21 = sbr.rel target = $region3
    $region8: #{tpu_custom_call.1} parent=1 // loop_exit
      _
    %1706 = vsyncpa [#allocation7], 1
    %s1707 = scalar_lea.sflag [#allocation7], 1
    %1708 = vsyncpa %s1707, 1
    %1709 = vsyncpa [#allocation10], 1
    %s1710 = scalar_lea.sflag [#allocation10], 1
    %1711 = vsyncpa %s1710, 1
    %1712 = vsyncpa [#allocation13], 1
    %s1713 = scalar_lea.sflag [#allocation13], 1
    %1714 = vsyncpa %s1713, 1
    %1715 = vsyncpa [#allocation8], 1
    %s1716 = scalar_lea.sflag [#allocation8], 1
    %1717 = vsyncpa %s1716, 1

</llo_original>
